<compile_context>
chip_gen: v5e
topology: v5e:2x2
jax: 0.10.0
libtpu: 0.0.40
codegen_flags: <defaults>
</compile_context>

<pallas_src>
import functools

import jax
import jax.numpy as jnp
from jax.experimental import pallas as pl
from jax.experimental.pallas import tpu as pltpu


def _window_attn_kernel(x_ref, wqkv_t_ref, bqkv_ref, wproj_t_ref, bproj_ref,
                        o_ref, heads_ref, *, tokens_per_window, num_heads,
                        compute_dtype):
    R, C = x_ref.shape                      # R = wb * N  (rows of this block)
    N = tokens_per_window
    WB = R // N
    H = num_heads
    hd = C // H
    cdt = compute_dtype

    # ---- QKV projection (qk scale already folded into the q rows host-side) ----
    x2 = x_ref[...].astype(cdt)                                        # (R, C)
    qkv = jnp.dot(x2, wqkv_t_ref[...],
                  preferred_element_type=jnp.float32) + bqkv_ref[...]  # (R, 3C) f32
    qkv_c = qkv.astype(cdt)   # single cast pass, hoisted out of the head loop

    # ---- per-head attention, batched over the WB windows in this block ----
    for h in range(H):
        q_h = qkv_c[:, 0 * C + h * hd:0 * C + (h + 1) * hd].reshape(WB, N, hd)
        k_h = qkv_c[:, 1 * C + h * hd:1 * C + (h + 1) * hd].reshape(WB, N, hd)
        v_h = qkv_c[:, 2 * C + h * hd:2 * C + (h + 1) * hd].reshape(WB, N, hd)

        s = jnp.einsum('bnd,bmd->bnm', q_h, k_h,
                       preferred_element_type=jnp.float32)             # (WB, N, N) f32
        # numerically stable softmax, kept in f32
        s = s - jnp.max(s, axis=-1, keepdims=True)
        p = jnp.exp(s)
        inv = pl.reciprocal(jnp.sum(p, axis=-1, keepdims=True),
                            approx=True)                               # (WB, N, 1)
        # attn_drop: p = 0.0 -> identity

        o_h = jnp.einsum('bnm,bmd->bnd', p.astype(cdt), v_h,
                         preferred_element_type=jnp.float32)           # (WB, N, hd) f32
        o_h = o_h * inv          # normalize after PV: hd cols per row instead of N

        # Stash the head output at its static lane offset (== concat(heads)).
        heads_ref[:, h * hd:(h + 1) * hd] = o_h.reshape(R, hd).astype(heads_ref.dtype)

    # ---- single output projection with full contraction depth K = C ----
    y = jnp.dot(heads_ref[...], wproj_t_ref[...],
                preferred_element_type=jnp.float32) + bproj_ref[...]
    # proj_drop: p = 0.0 -> identity
    o_ref[...] = y.astype(o_ref.dtype)


def _vmem_capacity_bytes():
    try:
        return int(pltpu.get_tpu_info().vmem_capacity_bytes)
    except Exception:
        return 128 * 1024 * 1024   # v5e / v6e default


def _estimate_vmem_bytes(wb, N, C, num_heads, compute_itemsize):
    """Rough resident-VMEM estimate for one grid step (double-buffered I/O,
    double-buffered weights, f32 qkv + casted copy, per-head score temporaries,
    heads scratch)."""
    R = wb * N
    io = 2 * (R * C * 4) * 2                                   # x block + out block, 2 bufs each
    weights = ((3 * C * C + C * C) * compute_itemsize + (3 * C + C) * 4) * 2
    qkv = R * 3 * C * 4 + R * 3 * C * compute_itemsize          # f32 qkv + casted copy
    scores = num_heads * wb * N * N * 4                          # s/p live ranges (unrolled loop)
    heads = R * C * compute_itemsize                             # heads scratch
    return io + weights + qkv + scores + heads + (1 << 20)       # + headroom


def _pick_window_batch(B_, N, C, num_heads, compute_itemsize, budget, *,
                       target_rows=512):
    """Largest-useful divisor of B_: aim for wb*N >= target_rows, keep >= 4 grid
    steps when possible (2 per TensorCore on dual-TC chips), respect the (8,128)
    second-minor constraint of the (wb*N, C) block, and fit the VMEM budget."""
    divisors = [d for d in range(1, B_ + 1) if B_ % d == 0]
    # (wb*N, C) block: second-minor dim must be a multiple of 8 or the full dim.
    aligned = [d for d in divisors if (d * N) % 8 == 0 or d == B_]
    for min_steps in (4, 2, 1):
        cands = [d for d in aligned if B_ // d >= min_steps]
        if cands:
            break
    fitting = [d for d in cands
               if _estimate_vmem_bytes(d, N, C, num_heads, compute_itemsize) <= budget]
    if not fitting:
        fitting = [cands[0]]
    for d in fitting:
        if d * N >= target_rows:
            return d
    return fitting[-1]


def window_attention(x, w_qkv, b_qkv, w_proj, b_proj, *, num_heads,
                     qk_scale=None, compute_dtype=jnp.bfloat16, window_batch=None):
    """x: (B_, N, C) f32. Returns (B_, N, C). compute_dtype=None -> pure f32 MXU path."""
    B_, N, C = x.shape
    hd = C // num_heads
    scale = qk_scale if qk_scale is not None else hd ** (-0.5)
    cdt = jnp.float32 if compute_dtype is None else compute_dtype
    csize = jnp.dtype(cdt).itemsize

    # Host-side, once: fold qk scale into q rows, pre-transpose, cast to compute dtype.
    scale_vec = jnp.concatenate([
        jnp.full((C,), scale, dtype=w_qkv.dtype),
        jnp.ones((2 * C,), dtype=w_qkv.dtype)])
    w_qkv_t = (w_qkv * scale_vec[:, None]).T.astype(cdt)        # (C, 3C)
    b_qkv2 = (b_qkv * scale_vec).reshape(1, 3 * C).astype(jnp.float32)
    w_proj_t = w_proj.T.astype(cdt)                             # (C, C)
    b_proj2 = b_proj.reshape(1, C).astype(jnp.float32)

    # Generation-gated VMEM budgeting (v7x: 64 MiB VMEM -> smaller plan).
    cap = _vmem_capacity_bytes()
    vmem_limit = max(min((cap * 3) // 4, 112 * 1024 * 1024), 32 * 1024 * 1024)
    budget = max(min(cap // 2, 64 * 1024 * 1024), 16 * 1024 * 1024)

    wb = window_batch if window_batch is not None else _pick_window_batch(
        B_, N, C, num_heads, csize, budget)
    assert B_ % wb == 0, "window_batch must divide B_"
    grid = (B_ // wb,)

    # Lane-dense 2-D presentation of input/output (free host reshape of contiguous data).
    x2 = x.reshape(B_ * N, C)

    kernel = functools.partial(_window_attn_kernel, tokens_per_window=N,
                               num_heads=num_heads, compute_dtype=cdt)

    flops = int(B_ * (2 * N * C * 3 * C                 # QKV projection
                      + num_heads * 4 * N * N * hd      # QK^T and P@V
                      + 2 * N * C * C))                 # output projection
    transcendentals = int(B_ * num_heads * N * N)       # exp in softmax
    bytes_accessed = int(4 * 2 * B_ * N * C             # x in + out (f32)
                         + csize * (3 * C * C + C * C)  # weights (compute dtype)
                         + 4 * (3 * C + C))             # biases (f32)

    out2 = pl.pallas_call(
        kernel,
        out_shape=jax.ShapeDtypeStruct((B_ * N, C), x.dtype),
        grid_spec=pltpu.PrefetchScalarGridSpec(
            num_scalar_prefetch=0,
            grid=grid,
            in_specs=[
                pl.BlockSpec((wb * N, C), lambda i: (i, 0)),     # wb windows of tokens
                pl.BlockSpec((C, 3 * C), lambda i: (0, 0)),      # W_qkv^T (scale folded, cdt)
                pl.BlockSpec((1, 3 * C), lambda i: (0, 0)),      # b_qkv   (scale folded, f32)
                pl.BlockSpec((C, C), lambda i: (0, 0)),          # W_proj^T (cdt)
                pl.BlockSpec((1, C), lambda i: (0, 0)),          # b_proj   (f32)
            ],
            out_specs=pl.BlockSpec((wb * N, C), lambda i: (i, 0)),
            scratch_shapes=[pltpu.VMEM((wb * N, C), cdt)],       # concat(heads) staging
        ),
        compiler_params=pltpu.CompilerParams(
            dimension_semantics=("parallel",),
            vmem_limit_bytes=int(vmem_limit)),
        cost_estimate=pl.CostEstimate(flops=flops,
                                      transcendentals=transcendentals,
                                      bytes_accessed=bytes_accessed),
    )(x2, w_qkv_t, b_qkv2, w_proj_t, b_proj2)
    return out2.reshape(B_, N, C)


def window_attention_ref(x, w_qkv, b_qkv, w_proj, b_proj, *, num_heads, qk_scale=None):
    """Pure-JAX reference mirroring the PyTorch forward exactly."""
    B_, N, C = x.shape
    hd = C // num_heads
    scale = qk_scale if qk_scale is not None else hd ** (-0.5)
    qkv = x @ w_qkv.T + b_qkv                                    # (B_, N, 3C)
    qkv = qkv.reshape(B_, N, 3, num_heads, hd).transpose(2, 0, 3, 1, 4)
    q, k, v = qkv[0], qkv[1], qkv[2]                             # (B_, H, N, hd)
    q = q * scale
    attn = q @ jnp.swapaxes(k, -2, -1)                           # (B_, H, N, N)
    attn = jax.nn.softmax(attn, axis=-1)
    out = (attn @ v).transpose(0, 2, 1, 3).reshape(B_, N, C)
    return out @ w_proj.T + b_proj


if __name__ == "__main__":
    # Small forward-implied shapes: dim (C)=32, window_size=(4,4) -> N=16 tokens,
    # num_heads=4, B_ = num_windows*batch = 16.
    B_, N, C, num_heads = 16, 16, 32, 4

    key = jax.random.PRNGKey(0)
    kx, kw1, kb1, kw2, kb2 = jax.random.split(key, 5)

    x = jax.random.normal(kx, (B_, N, C), dtype=jnp.float32)
    w_qkv = jax.random.normal(kw1, (3 * C, C), dtype=jnp.float32) * 0.05
    b_qkv = jax.random.normal(kb1, (3 * C,), dtype=jnp.float32) * 0.05
    w_proj = jax.random.normal(kw2, (C, C), dtype=jnp.float32) * 0.05
    b_proj = jax.random.normal(kb2, (C,), dtype=jnp.float32) * 0.05

    ref = window_attention_ref(x, w_qkv, b_qkv, w_proj, b_proj, num_heads=num_heads)

    # f32 MXU path: tight check (only the approx softmax reciprocal differs).
    out_f32 = window_attention(x, w_qkv, b_qkv, w_proj, b_proj,
                               num_heads=num_heads, compute_dtype=None)
    out_f32 = jax.block_until_ready(out_f32)
    assert out_f32.shape == (B_, N, C)
    assert jnp.allclose(out_f32, ref, atol=5e-3, rtol=5e-3), "f32 path mismatch vs reference"

    # Default path: bf16 MXU operands, f32 softmax/accumulation -> looser tolerance.
    out_bf16 = window_attention(x, w_qkv, b_qkv, w_proj, b_proj, num_heads=num_heads)
    out_bf16 = jax.block_until_ready(out_bf16)
    assert out_bf16.shape == (B_, N, C)
    assert jnp.allclose(out_bf16, ref, atol=3e-2, rtol=3e-2), "bf16 path mismatch vs reference"

    print("KERNEL_OK")
</pallas_src>

<mosaic_0001>
module attributes {stable_mosaic.version = 11 : i64} {
  func.func @_window_attn_kernel(%arg0: i32, %arg1: memref<64x32xf32, #tpu.memory_space<vmem>>, %arg2: memref<32x96xf32, #tpu.memory_space<vmem>>, %arg3: memref<1x96xf32, #tpu.memory_space<vmem>>, %arg4: memref<32x32xf32, #tpu.memory_space<vmem>>, %arg5: memref<1x32xf32, #tpu.memory_space<vmem>>, %arg6: memref<64x32xf32, #tpu.memory_space<vmem>>, %arg7: memref<64x32xf32, #tpu.memory_space<vmem>>) attributes {dimension_semantics = [#tpu.dimension_semantics<parallel>], iteration_bounds = array<i64: 4>, scalar_prefetch = 0 : i64, scratch_operands = 1 : i64, tpu.core_type = #tpu.core_type<tc>, window_params = [{transform_indices = @transform_0, window_bounds = array<i64: 64, 32>}, {pipeline_mode = #tpu.pipeline_mode<synchronous>, transform_indices = @transform_1, window_bounds = array<i64: 32, 96>}, {pipeline_mode = #tpu.pipeline_mode<synchronous>, transform_indices = @transform_2, window_bounds = array<i64: 1, 96>}, {pipeline_mode = #tpu.pipeline_mode<synchronous>, transform_indices = @transform_3, window_bounds = array<i64: 32, 32>}, {pipeline_mode = #tpu.pipeline_mode<synchronous>, transform_indices = @transform_4, window_bounds = array<i64: 1, 32>}, {transform_indices = @transform_5, window_bounds = array<i64: 64, 32>}]} {
    %c0 = arith.constant 0 : index
    %c0_0 = arith.constant 0 : index
    %0 = vector.load %arg1[%c0, %c0_0] : memref<64x32xf32, #tpu.memory_space<vmem>>, vector<64x32xf32>
    %c0_1 = arith.constant 0 : index
    %c0_2 = arith.constant 0 : index
    %1 = vector.load %arg2[%c0_1, %c0_2] : memref<32x96xf32, #tpu.memory_space<vmem>>, vector<32x96xf32>
    %cst = arith.constant dense<0.000000e+00> : vector<64x96xf32>
    %2 = tpu.matmul %0, %1, %cst {dimension_numbers = #tpu.dot_dimension_numbers<[1], [0], [0], [1], [0, 0, 1, 1], [], []>} : vector<64x32xf32>, vector<32x96xf32>, vector<64x96xf32> -> vector<64x96xf32>
    %c0_3 = arith.constant 0 : index
    %c0_4 = arith.constant 0 : index
    %3 = vector.load %arg3[%c0_3, %c0_4] : memref<1x96xf32, #tpu.memory_space<vmem>>, vector<1x96xf32>
    %4 = vector.broadcast %3 : vector<1x96xf32> to vector<64x96xf32>
    %5 = arith.addf %2, %4 : vector<64x96xf32>
    %6 = vector.extract_strided_slice %5 {offsets = [0, 0], sizes = [64, 8], strides = [1, 1]} : vector<64x96xf32> to vector<64x8xf32>
    %7 = vector.shape_cast %6 : vector<64x8xf32> to vector<4x16x8xf32>
    %8 = vector.extract_strided_slice %5 {offsets = [0, 32], sizes = [64, 8], strides = [1, 1]} : vector<64x96xf32> to vector<64x8xf32>
    %9 = vector.shape_cast %8 : vector<64x8xf32> to vector<4x16x8xf32>
    %10 = vector.extract_strided_slice %5 {offsets = [0, 64], sizes = [64, 8], strides = [1, 1]} : vector<64x96xf32> to vector<64x8xf32>
    %11 = vector.shape_cast %10 : vector<64x8xf32> to vector<4x16x8xf32>
    "tpu.trace_start"() <{level = 10 : i32, message = "bnd,bmd->bnm"}> : () -> ()
    %cst_5 = arith.constant dense<0.000000e+00> : vector<4x16x16xf32>
    %12 = tpu.matmul %7, %9, %cst_5 {dimension_numbers = #tpu.dot_dimension_numbers<[2], [2], [1], [1], [0, 0, 0, 1, 1, 1], [0], [0]>} : vector<4x16x8xf32>, vector<4x16x8xf32>, vector<4x16x16xf32> -> vector<4x16x16xf32>
    "tpu.trace_stop"() : () -> ()
    %cst_6 = arith.constant dense<0xFF800000> : vector<4x16xf32>
    %13 = vector.multi_reduction <maximumf>, %12, %cst_6 [2] : vector<4x16x16xf32> to vector<4x16xf32>
    %14 = vector.shape_cast %13 : vector<4x16xf32> to vector<4x16x1xf32>
    %15 = vector.broadcast %14 : vector<4x16x1xf32> to vector<4x16x16xf32>
    %16 = arith.subf %12, %15 : vector<4x16x16xf32>
    %17 = math.exp %16 : vector<4x16x16xf32>
    %cst_7 = arith.constant dense<0.000000e+00> : vector<4x16xf32>
    %18 = vector.multi_reduction <add>, %17, %cst_7 [2] : vector<4x16x16xf32> to vector<4x16xf32>
    %19 = vector.shape_cast %18 : vector<4x16xf32> to vector<4x16x1xf32>
    %20 = tpu.reciprocal %19 {approx = true} : vector<4x16x1xf32> -> vector<4x16x1xf32>
    "tpu.trace_start"() <{level = 10 : i32, message = "bnm,bmd->bnd"}> : () -> ()
    %cst_8 = arith.constant dense<0.000000e+00> : vector<4x16x8xf32>
    %21 = tpu.matmul %17, %11, %cst_8 {dimension_numbers = #tpu.dot_dimension_numbers<[2], [1], [1], [2], [0, 0, 0, 1, 1, 2], [0], [0]>} : vector<4x16x16xf32>, vector<4x16x8xf32>, vector<4x16x8xf32> -> vector<4x16x8xf32>
    "tpu.trace_stop"() : () -> ()
    %22 = vector.broadcast %20 : vector<4x16x1xf32> to vector<4x16x8xf32>
    %23 = arith.mulf %21, %22 : vector<4x16x8xf32>
    %24 = vector.shape_cast %23 : vector<4x16x8xf32> to vector<64x8xf32>
    %c0_9 = arith.constant 0 : index
    %c0_10 = arith.constant 0 : index
    %25 = vector.load %arg7[%c0_9, %c0_10] : memref<64x32xf32, #tpu.memory_space<vmem>>, vector<64x8xf32>
    tpu.vector_store %arg7[%c0_9, %c0_10], %24 {strides = array<i32>} : memref<64x32xf32, #tpu.memory_space<vmem>>, vector<64x8xf32>,
    %26 = vector.extract_strided_slice %5 {offsets = [0, 8], sizes = [64, 8], strides = [1, 1]} : vector<64x96xf32> to vector<64x8xf32>
    %27 = vector.shape_cast %26 : vector<64x8xf32> to vector<4x16x8xf32>
    %28 = vector.extract_strided_slice %5 {offsets = [0, 40], sizes = [64, 8], strides = [1, 1]} : vector<64x96xf32> to vector<64x8xf32>
    %29 = vector.shape_cast %28 : vector<64x8xf32> to vector<4x16x8xf32>
    %30 = vector.extract_strided_slice %5 {offsets = [0, 72], sizes = [64, 8], strides = [1, 1]} : vector<64x96xf32> to vector<64x8xf32>
    %31 = vector.shape_cast %30 : vector<64x8xf32> to vector<4x16x8xf32>
    "tpu.trace_start"() <{level = 10 : i32, message = "bnd,bmd->bnm"}> : () -> ()
    %cst_11 = arith.constant dense<0.000000e+00> : vector<4x16x16xf32>
    %32 = tpu.matmul %27, %29, %cst_11 {dimension_numbers = #tpu.dot_dimension_numbers<[2], [2], [1], [1], [0, 0, 0, 1, 1, 1], [0], [0]>} : vector<4x16x8xf32>, vector<4x16x8xf32>, vector<4x16x16xf32> -> vector<4x16x16xf32>
    "tpu.trace_stop"() : () -> ()
    %cst_12 = arith.constant dense<0xFF800000> : vector<4x16xf32>
    %33 = vector.multi_reduction <maximumf>, %32, %cst_12 [2] : vector<4x16x16xf32> to vector<4x16xf32>
    %34 = vector.shape_cast %33 : vector<4x16xf32> to vector<4x16x1xf32>
    %35 = vector.broadcast %34 : vector<4x16x1xf32> to vector<4x16x16xf32>
    %36 = arith.subf %32, %35 : vector<4x16x16xf32>
    %37 = math.exp %36 : vector<4x16x16xf32>
    %cst_13 = arith.constant dense<0.000000e+00> : vector<4x16xf32>
    %38 = vector.multi_reduction <add>, %37, %cst_13 [2] : vector<4x16x16xf32> to vector<4x16xf32>
    %39 = vector.shape_cast %38 : vector<4x16xf32> to vector<4x16x1xf32>
    %40 = tpu.reciprocal %39 {approx = true} : vector<4x16x1xf32> -> vector<4x16x1xf32>
    "tpu.trace_start"() <{level = 10 : i32, message = "bnm,bmd->bnd"}> : () -> ()
    %cst_14 = arith.constant dense<0.000000e+00> : vector<4x16x8xf32>
    %41 = tpu.matmul %37, %31, %cst_14 {dimension_numbers = #tpu.dot_dimension_numbers<[2], [1], [1], [2], [0, 0, 0, 1, 1, 2], [0], [0]>} : vector<4x16x16xf32>, vector<4x16x8xf32>, vector<4x16x8xf32> -> vector<4x16x8xf32>
    "tpu.trace_stop"() : () -> ()
    %42 = vector.broadcast %40 : vector<4x16x1xf32> to vector<4x16x8xf32>
    %43 = arith.mulf %41, %42 : vector<4x16x8xf32>
    %44 = vector.shape_cast %43 : vector<4x16x8xf32> to vector<64x8xf32>
    %c0_15 = arith.constant 0 : index
    %c8 = arith.constant 8 : index
    %45 = vector.load %arg7[%c0_15, %c8] : memref<64x32xf32, #tpu.memory_space<vmem>>, vector<64x8xf32>
    tpu.vector_store %arg7[%c0_15, %c8], %44 {strides = array<i32>} : memref<64x32xf32, #tpu.memory_space<vmem>>, vector<64x8xf32>,
    %46 = vector.extract_strided_slice %5 {offsets = [0, 16], sizes = [64, 8], strides = [1, 1]} : vector<64x96xf32> to vector<64x8xf32>
    %47 = vector.shape_cast %46 : vector<64x8xf32> to vector<4x16x8xf32>
    %48 = vector.extract_strided_slice %5 {offsets = [0, 48], sizes = [64, 8], strides = [1, 1]} : vector<64x96xf32> to vector<64x8xf32>
    %49 = vector.shape_cast %48 : vector<64x8xf32> to vector<4x16x8xf32>
    %50 = vector.extract_strided_slice %5 {offsets = [0, 80], sizes = [64, 8], strides = [1, 1]} : vector<64x96xf32> to vector<64x8xf32>
    %51 = vector.shape_cast %50 : vector<64x8xf32> to vector<4x16x8xf32>
    "tpu.trace_start"() <{level = 10 : i32, message = "bnd,bmd->bnm"}> : () -> ()
    %cst_16 = arith.constant dense<0.000000e+00> : vector<4x16x16xf32>
    %52 = tpu.matmul %47, %49, %cst_16 {dimension_numbers = #tpu.dot_dimension_numbers<[2], [2], [1], [1], [0, 0, 0, 1, 1, 1], [0], [0]>} : vector<4x16x8xf32>, vector<4x16x8xf32>, vector<4x16x16xf32> -> vector<4x16x16xf32>
    "tpu.trace_stop"() : () -> ()
    %cst_17 = arith.constant dense<0xFF800000> : vector<4x16xf32>
    %53 = vector.multi_reduction <maximumf>, %52, %cst_17 [2] : vector<4x16x16xf32> to vector<4x16xf32>
    %54 = vector.shape_cast %53 : vector<4x16xf32> to vector<4x16x1xf32>
    %55 = vector.broadcast %54 : vector<4x16x1xf32> to vector<4x16x16xf32>
    %56 = arith.subf %52, %55 : vector<4x16x16xf32>
    %57 = math.exp %56 : vector<4x16x16xf32>
    %cst_18 = arith.constant dense<0.000000e+00> : vector<4x16xf32>
    %58 = vector.multi_reduction <add>, %57, %cst_18 [2] : vector<4x16x16xf32> to vector<4x16xf32>
    %59 = vector.shape_cast %58 : vector<4x16xf32> to vector<4x16x1xf32>
    %60 = tpu.reciprocal %59 {approx = true} : vector<4x16x1xf32> -> vector<4x16x1xf32>
    "tpu.trace_start"() <{level = 10 : i32, message = "bnm,bmd->bnd"}> : () -> ()
    %cst_19 = arith.constant dense<0.000000e+00> : vector<4x16x8xf32>
    %61 = tpu.matmul %57, %51, %cst_19 {dimension_numbers = #tpu.dot_dimension_numbers<[2], [1], [1], [2], [0, 0, 0, 1, 1, 2], [0], [0]>} : vector<4x16x16xf32>, vector<4x16x8xf32>, vector<4x16x8xf32> -> vector<4x16x8xf32>
    "tpu.trace_stop"() : () -> ()
    %62 = vector.broadcast %60 : vector<4x16x1xf32> to vector<4x16x8xf32>
    %63 = arith.mulf %61, %62 : vector<4x16x8xf32>
    %64 = vector.shape_cast %63 : vector<4x16x8xf32> to vector<64x8xf32>
    %c0_20 = arith.constant 0 : index
    %c16 = arith.constant 16 : index
    %65 = vector.load %arg7[%c0_20, %c16] : memref<64x32xf32, #tpu.memory_space<vmem>>, vector<64x8xf32>
    tpu.vector_store %arg7[%c0_20, %c16], %64 {strides = array<i32>} : memref<64x32xf32, #tpu.memory_space<vmem>>, vector<64x8xf32>,
    %66 = vector.extract_strided_slice %5 {offsets = [0, 24], sizes = [64, 8], strides = [1, 1]} : vector<64x96xf32> to vector<64x8xf32>
    %67 = vector.shape_cast %66 : vector<64x8xf32> to vector<4x16x8xf32>
    %68 = vector.extract_strided_slice %5 {offsets = [0, 56], sizes = [64, 8], strides = [1, 1]} : vector<64x96xf32> to vector<64x8xf32>
    %69 = vector.shape_cast %68 : vector<64x8xf32> to vector<4x16x8xf32>
    %70 = vector.extract_strided_slice %5 {offsets = [0, 88], sizes = [64, 8], strides = [1, 1]} : vector<64x96xf32> to vector<64x8xf32>
    %71 = vector.shape_cast %70 : vector<64x8xf32> to vector<4x16x8xf32>
    "tpu.trace_start"() <{level = 10 : i32, message = "bnd,bmd->bnm"}> : () -> ()
    %cst_21 = arith.constant dense<0.000000e+00> : vector<4x16x16xf32>
    %72 = tpu.matmul %67, %69, %cst_21 {dimension_numbers = #tpu.dot_dimension_numbers<[2], [2], [1], [1], [0, 0, 0, 1, 1, 1], [0], [0]>} : vector<4x16x8xf32>, vector<4x16x8xf32>, vector<4x16x16xf32> -> vector<4x16x16xf32>
    "tpu.trace_stop"() : () -> ()
    %cst_22 = arith.constant dense<0xFF800000> : vector<4x16xf32>
    %73 = vector.multi_reduction <maximumf>, %72, %cst_22 [2] : vector<4x16x16xf32> to vector<4x16xf32>
    %74 = vector.shape_cast %73 : vector<4x16xf32> to vector<4x16x1xf32>
    %75 = vector.broadcast %74 : vector<4x16x1xf32> to vector<4x16x16xf32>
    %76 = arith.subf %72, %75 : vector<4x16x16xf32>
    %77 = math.exp %76 : vector<4x16x16xf32>
    %cst_23 = arith.constant dense<0.000000e+00> : vector<4x16xf32>
    %78 = vector.multi_reduction <add>, %77, %cst_23 [2] : vector<4x16x16xf32> to vector<4x16xf32>
    %79 = vector.shape_cast %78 : vector<4x16xf32> to vector<4x16x1xf32>
    %80 = tpu.reciprocal %79 {approx = true} : vector<4x16x1xf32> -> vector<4x16x1xf32>
    "tpu.trace_start"() <{level = 10 : i32, message = "bnm,bmd->bnd"}> : () -> ()
    %cst_24 = arith.constant dense<0.000000e+00> : vector<4x16x8xf32>
    %81 = tpu.matmul %77, %71, %cst_24 {dimension_numbers = #tpu.dot_dimension_numbers<[2], [1], [1], [2], [0, 0, 0, 1, 1, 2], [0], [0]>} : vector<4x16x16xf32>, vector<4x16x8xf32>, vector<4x16x8xf32> -> vector<4x16x8xf32>
    "tpu.trace_stop"() : () -> ()
    %82 = vector.broadcast %80 : vector<4x16x1xf32> to vector<4x16x8xf32>
    %83 = arith.mulf %81, %82 : vector<4x16x8xf32>
    %84 = vector.shape_cast %83 : vector<4x16x8xf32> to vector<64x8xf32>
    %c0_25 = arith.constant 0 : index
    %c24 = arith.constant 24 : index
    %85 = vector.load %arg7[%c0_25, %c24] : memref<64x32xf32, #tpu.memory_space<vmem>>, vector<64x8xf32>
    tpu.vector_store %arg7[%c0_25, %c24], %84 {strides = array<i32>} : memref<64x32xf32, #tpu.memory_space<vmem>>, vector<64x8xf32>,
    %c0_26 = arith.constant 0 : index
    %c0_27 = arith.constant 0 : index
    %86 = vector.load %arg7[%c0_26, %c0_27] : memref<64x32xf32, #tpu.memory_space<vmem>>, vector<64x32xf32>
    %c0_28 = arith.constant 0 : index
    %c0_29 = arith.constant 0 : index
    %87 = vector.load %arg4[%c0_28, %c0_29] : memref<32x32xf32, #tpu.memory_space<vmem>>, vector<32x32xf32>
    %cst_30 = arith.constant dense<0.000000e+00> : vector<64x32xf32>
    %88 = tpu.matmul %86, %87, %cst_30 {dimension_numbers = #tpu.dot_dimension_numbers<[1], [0], [0], [1], [0, 0, 1, 1], [], []>} : vector<64x32xf32>, vector<32x32xf32>, vector<64x32xf32> -> vector<64x32xf32>
    %c0_31 = arith.constant 0 : index
    %c0_32 = arith.constant 0 : index
    %89 = vector.load %arg5[%c0_31, %c0_32] : memref<1x32xf32, #tpu.memory_space<vmem>>, vector<1x32xf32>
    %90 = vector.broadcast %89 : vector<1x32xf32> to vector<64x32xf32>
    %91 = arith.addf %88, %90 : vector<64x32xf32>
    %c0_33 = arith.constant 0 : index
    %c0_34 = arith.constant 0 : index
    %92 = vector.load %arg6[%c0_33, %c0_34] : memref<64x32xf32, #tpu.memory_space<vmem>>, vector<64x32xf32>
    tpu.vector_store %arg6[%c0_33, %c0_34], %91 {strides = array<i32>} : memref<64x32xf32, #tpu.memory_space<vmem>>, vector<64x32xf32>,
    return
  }
  func.func @transform_0(%arg0: i32) -> (i32, i32) {
    %c0_i32 = arith.constant 0 : i32
    %c0_i32_0 = arith.constant 0 : i32
    return %arg0, %c0_i32 : i32, i32
  }
  func.func @transform_1(%arg0: i32) -> (i32, i32) {
    %c0_i32 = arith.constant 0 : i32
    %c0_i32_0 = arith.constant 0 : i32
    %c0_i32_1 = arith.constant 0 : i32
    return %c0_i32, %c0_i32_0 : i32, i32
  }
  func.func @transform_2(%arg0: i32) -> (i32, i32) {
    %c0_i32 = arith.constant 0 : i32
    %c0_i32_0 = arith.constant 0 : i32
    %c0_i32_1 = arith.constant 0 : i32
    return %c0_i32, %c0_i32_0 : i32, i32
  }
  func.func @transform_3(%arg0: i32) -> (i32, i32) {
    %c0_i32 = arith.constant 0 : i32
    %c0_i32_0 = arith.constant 0 : i32
    %c0_i32_1 = arith.constant 0 : i32
    return %c0_i32, %c0_i32_0 : i32, i32
  }
  func.func @transform_4(%arg0: i32) -> (i32, i32) {
    %c0_i32 = arith.constant 0 : i32
    %c0_i32_0 = arith.constant 0 : i32
    %c0_i32_1 = arith.constant 0 : i32
    return %c0_i32, %c0_i32_0 : i32, i32
  }
  func.func @transform_5(%arg0: i32) -> (i32, i32) {
    %c0_i32 = arith.constant 0 : i32
    %c0_i32_0 = arith.constant 0 : i32
    return %arg0, %c0_i32 : i32, i32
  }
}

</mosaic_0001>

<llo_original>
// kernel: tpu_custom_call.1
$region0: #{tpu_custom_call.1}
  #allocation0 [shape = 'u32[]', space=smem, size = 0x4, offset = 0x4, fixed_abs, tag = 'smem constant byte address 0x4 - core index']
  #allocation1 [shape = 'u32[72,128]{1,0:T(1,128)}', space=vmem, size = 0x9000, scoped, tag = 'internal scratch']
  #allocation2 [shape = 'f32[64,32]{1,0:T(8,128)}', space=vmem, size = 0x8000, scoped, tag = 'scratch operand']
  %s0 = inlined_call_operand.vmem [shape: f32[256,32], index: 0, kind: input, shape index: {}]
  %s1 = inlined_call_operand.vmem [shape: f32[32,96], index: 1, kind: input, shape index: {}]
  %s2 = inlined_call_operand.vmem [shape: f32[1,96], index: 2, kind: input, shape index: {}]
  %s3 = inlined_call_operand.vmem [shape: f32[32,32], index: 3, kind: input, shape index: {}]
  %s4 = inlined_call_operand.vmem [shape: f32[1,32], index: 4, kind: input, shape index: {}]
  %s5 = inlined_call_operand.vmem [shape: f32[256,32], index: 5, kind: output, shape index: {}]
  %s6 = sld [smem:[#allocation0]]
  $region53: #{tpu_custom_call.1} parent=0
    _
  %s8 = ssub.s32 1, %s6
  %s9 = scalar_select 0, %s8, %s6
  loop: start=0, step=1, limit=6
  $region2: #{tpu_custom_call.1} parent=0 // loop_pre_header
    _
  $region3: #{tpu_custom_call.1} parent=0 // loop_header
    %s11 = sphi 0, %s15
    %p12 = scmp.ge.s32.totalorder %s11, 6
    %s21 = sphi 0, %s23
    %s24 = sphi 0, %s21
    %s25 = sphi 0, %s24
    %s41 = sphi 0, %s25
    %s45 = sphi 0, %s45
    %s47 = sphi 0, %s45
    %s48 = sphi 0, %s47
    %s62 = sphi 0, %s48
    %s66 = sphi 0, %s66
    %s68 = sphi 0, %s66
    %s69 = sphi 0, %s68
    %s83 = sphi 0, %s69
    %s87 = sphi 0, %s87
    %s89 = sphi 0, %s87
    %s90 = sphi 0, %s89
    %s104 = sphi 0, %s90
    %s108 = sphi 0, %s108
    %s110 = sphi 0, %s108
    %s111 = sphi 0, %s110
    %s125 = sphi 0, %s111
    %s131 = sphi 0, %s133
    %s134 = sphi 0, %s131
    %s135 = sphi 0, %s134
    %s151 = sphi 0, %s135
  $region4: #{tpu_custom_call.1} parent=0 // loop_header_branch
    %14 = sbr.rel (%p12) target = $region8
  $region5: #{tpu_custom_call.1} parent=0 // loop_body
    %s16 = ssub.s32 %s11, 1
    %s17 = ssub.s32 %s11, 2
    %s18 = sadd.s32 %s11, 1
    %s19 = ssub.s32 %s11, %s18
    %p20 = scmp.eq.s32.totalorder %s19, 0
    %s22 = sadd.s32 %s21, 1
    %s23 = scalar_select %p20, %s21, %s22
    %p26 = pneg %p20
    %p27 = scmp.eq.s32.totalorder %s11, 3
    %p28 = por %p26, %p27
    %p29 = scmp.ne.s32.totalorder %s21, %s24
    %p30 = scmp.eq.s32.totalorder %s11, 0
    %p31 = por %p29, %p30
    %p32 = scmp.ne.s32.totalorder %s21, %s24
    %p33 = scmp.eq.s32.totalorder %s16, 3
    %p34 = por %p32, %p33
    %p35 = scmp.ne.s32.totalorder %s24, %s25
    %p36 = scmp.eq.s32.totalorder %s16, 0
    %p37 = por %p35, %p36
    %p38 = scmp.ne.s32.totalorder %s24, %s25
    %p39 = scmp.eq.s32.totalorder %s17, 3
    %p40 = por %p38, %p39
    %p42 = scmp.ne.s32.totalorder %s25, %s41
    %p43 = scmp.eq.s32.totalorder %s17, 0
    %p44 = por %p42, %p43
    %s46 = sadd.s32 %s45, 1
    %p49 = scmp.eq.s32.totalorder %s11, 3
    %p50 = scmp.ne.s32.totalorder %s45, %s47
    %p51 = scmp.eq.s32.totalorder %s11, 0
    %p52 = por %p50, %p51
    %p53 = scmp.ne.s32.totalorder %s45, %s47
    %p54 = scmp.eq.s32.totalorder %s16, 3
    %p55 = por %p53, %p54
    %p56 = scmp.ne.s32.totalorder %s47, %s48
    %p57 = scmp.eq.s32.totalorder %s16, 0
    %p58 = por %p56, %p57
    %p59 = scmp.ne.s32.totalorder %s47, %s48
    %p60 = scmp.eq.s32.totalorder %s17, 3
    %p61 = por %p59, %p60
    %p63 = scmp.ne.s32.totalorder %s48, %s62
    %p64 = scmp.eq.s32.totalorder %s17, 0
    %p65 = por %p63, %p64
    %s67 = sadd.s32 %s66, 1
    %p70 = scmp.eq.s32.totalorder %s11, 3
    %p71 = scmp.ne.s32.totalorder %s66, %s68
    %p72 = scmp.eq.s32.totalorder %s11, 0
    %p73 = por %p71, %p72
    %p74 = scmp.ne.s32.totalorder %s66, %s68
    %p75 = scmp.eq.s32.totalorder %s16, 3
    %p76 = por %p74, %p75
    %p77 = scmp.ne.s32.totalorder %s68, %s69
    %p78 = scmp.eq.s32.totalorder %s16, 0
    %p79 = por %p77, %p78
    %p80 = scmp.ne.s32.totalorder %s68, %s69
    %p81 = scmp.eq.s32.totalorder %s17, 3
    %p82 = por %p80, %p81
    %p84 = scmp.ne.s32.totalorder %s69, %s83
    %p85 = scmp.eq.s32.totalorder %s17, 0
    %p86 = por %p84, %p85
    %s88 = sadd.s32 %s87, 1
    %p91 = scmp.eq.s32.totalorder %s11, 3
    %p92 = scmp.ne.s32.totalorder %s87, %s89
    %p93 = scmp.eq.s32.totalorder %s11, 0
    %p94 = por %p92, %p93
    %p95 = scmp.ne.s32.totalorder %s87, %s89
    %p96 = scmp.eq.s32.totalorder %s16, 3
    %p97 = por %p95, %p96
    %p98 = scmp.ne.s32.totalorder %s89, %s90
    %p99 = scmp.eq.s32.totalorder %s16, 0
    %p100 = por %p98, %p99
    %p101 = scmp.ne.s32.totalorder %s89, %s90
    %p102 = scmp.eq.s32.totalorder %s17, 3
    %p103 = por %p101, %p102
    %p105 = scmp.ne.s32.totalorder %s90, %s104
    %p106 = scmp.eq.s32.totalorder %s17, 0
    %p107 = por %p105, %p106
    %s109 = sadd.s32 %s108, 1
    %p112 = scmp.eq.s32.totalorder %s11, 3
    %p113 = scmp.ne.s32.totalorder %s108, %s110
    %p114 = scmp.eq.s32.totalorder %s11, 0
    %p115 = por %p113, %p114
    %p116 = scmp.ne.s32.totalorder %s108, %s110
    %p117 = scmp.eq.s32.totalorder %s16, 3
    %p118 = por %p116, %p117
    %p119 = scmp.ne.s32.totalorder %s110, %s111
    %p120 = scmp.eq.s32.totalorder %s16, 0
    %p121 = por %p119, %p120
    %p122 = scmp.ne.s32.totalorder %s110, %s111
    %p123 = scmp.eq.s32.totalorder %s17, 3
    %p124 = por %p122, %p123
    %p126 = scmp.ne.s32.totalorder %s111, %s125
    %p127 = scmp.eq.s32.totalorder %s17, 0
    %p128 = por %p126, %p127
    %s129 = ssub.s32 %s11, %s18
    %p130 = scmp.eq.s32.totalorder %s129, 0
    %s132 = sadd.s32 %s131, 1
    %s133 = scalar_select %p130, %s131, %s132
    %p136 = pneg %p130
    %p137 = scmp.eq.s32.totalorder %s11, 3
    %p138 = por %p136, %p137
    %p139 = scmp.ne.s32.totalorder %s131, %s134
    %p140 = scmp.eq.s32.totalorder %s11, 0
    %p141 = por %p139, %p140
    %p142 = scmp.ne.s32.totalorder %s131, %s134
    %p143 = scmp.eq.s32.totalorder %s16, 3
    %p144 = por %p142, %p143
    %p145 = scmp.ne.s32.totalorder %s134, %s135
    %p146 = scmp.eq.s32.totalorder %s16, 0
    %p147 = por %p145, %p146
    %p148 = scmp.ne.s32.totalorder %s134, %s135
    %p149 = scmp.eq.s32.totalorder %s17, 3
    %p150 = por %p148, %p149
    %p152 = scmp.ne.s32.totalorder %s135, %s151
    %p153 = scmp.eq.s32.totalorder %s17, 0
    %p154 = por %p152, %p153
    %p155 = scmp.le.s32.totalorder 1, %s11
    %p156 = scmp.lt.s32.totalorder %s11, 5
    %p157 = pnand %p155, %p156
    %p158 = pneg %p157
    // Predicated region
    $region9: #{tpu_custom_call.1} parent=5 // pred_check
      _
    $region10: #{tpu_custom_call.1} parent=5 // pred_check_branch
      %160 = sbr.rel (%p157) target = $region12
    $region11: #{tpu_custom_call.1} parent=5 // pred_region
      %s161 = ssub.s32 %s11, 1
      // Predicated region
      $region13: #{tpu_custom_call.1} parent=11 // pred_check
        %p162 = pneg %p58
      $region14: #{tpu_custom_call.1} parent=11 // pred_check_branch
        %164 = sbr.rel (%p162) target = $region16
      $region15: #{tpu_custom_call.1} parent=11 // pred_region
        _
      $region16: #{tpu_custom_call.1} parent=11 // pred_fallthru
        _
      // Predicated region
      $region17: #{tpu_custom_call.1} parent=11 // pred_check
        %p165 = pneg %p79
      $region18: #{tpu_custom_call.1} parent=11 // pred_check_branch
        %167 = sbr.rel (%p165) target = $region20
      $region19: #{tpu_custom_call.1} parent=11 // pred_region
        _
      $region20: #{tpu_custom_call.1} parent=11 // pred_fallthru
        _
      // Predicated region
      $region21: #{tpu_custom_call.1} parent=11 // pred_check
        %p168 = pneg %p100
      $region22: #{tpu_custom_call.1} parent=11 // pred_check_branch
        %170 = sbr.rel (%p168) target = $region24
      $region23: #{tpu_custom_call.1} parent=11 // pred_region
        _
      $region24: #{tpu_custom_call.1} parent=11 // pred_fallthru
        _
      // Predicated region
      $region25: #{tpu_custom_call.1} parent=11 // pred_check
        %p171 = pneg %p121
      $region26: #{tpu_custom_call.1} parent=11 // pred_check_branch
        %173 = sbr.rel (%p171) target = $region28
      $region27: #{tpu_custom_call.1} parent=11 // pred_region
        _
      $region28: #{tpu_custom_call.1} parent=11 // pred_fallthru
        _
    $region12: #{tpu_custom_call.1} parent=5 // pred_fallthru
      _
    %p174 = scmp.lt.s32.totalorder %s11, 4
    // Predicated region
    $region29: #{tpu_custom_call.1} parent=5 // pred_check
      %p175 = pneg %p174
    $region30: #{tpu_custom_call.1} parent=5 // pred_check_branch
      %177 = sbr.rel (%p175) target = $region32
    $region31: #{tpu_custom_call.1} parent=5 // pred_region
      // Predicated region
      $region33: #{tpu_custom_call.1} parent=31 // pred_check
        %p178 = pneg %p31
      $region34: #{tpu_custom_call.1} parent=31 // pred_check_branch
        %180 = sbr.rel (%p178) target = $region36
      $region35: #{tpu_custom_call.1} parent=31 // pred_region
        %s181 = smul.u32 8, %s11
        %p182 = scmp.lt.s32.totalorder %s181, 31
        %s183 = scalar_select %p182, %s181, 31
        %s184 = smul.addr %s183, 8
        %s185 = scalar_lea.vmem %s0, %s184
        %s186 = smul.u32 8, %s11
      $region36: #{tpu_custom_call.1} parent=31 // pred_fallthru
        _
    $region32: #{tpu_custom_call.1} parent=5 // pred_fallthru
      _
    %p187 = scmp.le.s32.totalorder 1, %s11
    %p188 = scmp.lt.s32.totalorder %s11, 5
    %p189 = pnand %p187, %p188
    %p190 = pneg %p189
    // Predicated region
    $region37: #{tpu_custom_call.1} parent=5 // pred_check
      _
    $region38: #{tpu_custom_call.1} parent=5 // pred_check_branch
      %192 = sbr.rel (%p189) target = $region40
    $region39: #{tpu_custom_call.1} parent=5 // pred_region
      %s193 = ssub.s32 %s11, 1
      %s194 = smul.u32 8, %s16
      %p195 = scmp.lt.s32.totalorder %s194, 31
      %s196 = scalar_select %p195, %s194, 31
      %s197 = smul.addr %s196, 8
      %s198 = scalar_lea.vmem %s0, %s197
      %p199 = pneg %p37
      %p200 = pneg %p34
      %p201 = pneg %p58
      %p202 = pneg %p55
      %p203 = pneg %p79
      %p204 = pneg %p76
      %p205 = pneg %p100
      %p206 = pneg %p97
      %p207 = pneg %p121
      %p208 = pneg %p118
      %p209 = pneg %p147
      %p210 = pneg %p144
      %s211 = smul.u32 8, %s16
      %p212 = scmp.lt.s32.totalorder %s211, 31
      %s213 = scalar_select %p212, %s211, 31
      %s214 = smul.addr %s213, 8
      %s215 = scalar_lea.vmem %s5, %s214
      %s216 = smul.u32 8, %s16
      %p217 = scmp.lt.s32.totalorder %s216, 31
      %s218 = scalar_select %p217, %s216, 31
      %s219 = smul.addr %s218, 8
      %s220 = scalar_lea.vmem %s0, %s219
      %s221 = smul.u32 8, %s16
      %s222 = smul.u32 8, %s16
      %p223 = scmp.lt.s32.totalorder %s222, 31
      %s224 = scalar_select %p223, %s222, 31
      %s225 = smul.addr %s224, 8
      %s226 = scalar_lea.vmem %s5, %s225
      %s227 = smul.u32 8, %s16
      %v228 = vld [vmem:[%s220] sm:$0xff]
      %v229 = vld [vmem:[%s220 + $0x8] sm:$0xff]
      %v230 = vld [vmem:[%s220 + $0x10] sm:$0xff]
      %v231 = vld [vmem:[%s220 + $0x18] sm:$0xff]
      %v232 = vld [vmem:[%s220 + $0x20] sm:$0xff]
      %v233 = vld [vmem:[%s220 + $0x28] sm:$0xff]
      %v234 = vld [vmem:[%s220 + $0x30] sm:$0xff]
      %v235 = vld [vmem:[%s220 + $0x38] sm:$0xff]
      %v236 = vld [vmem:[%s1] sm:$0xff]
      %v237 = vld [vmem:[%s1 + $0x8] sm:$0xff]
      %v238 = vld [vmem:[%s1 + $0x10] sm:$0xff]
      %v239 = vld [vmem:[%s1 + $0x18] sm:$0xff]
      %v240 = vld [vmem:[%s2] sm:$0x1]
      %v242 = vperm.slane %v240, 0
      %vm244 = vcmask 261120
      %v246 = vsel %vm244, %v228, 0
      %v249 = vsel %vm244, %v229, 0
      %v252 = vsel %vm244, %v230, 0
      %v255 = vsel %vm244, %v231, 0
      %v258 = vsel %vm244, %v232, 0
      %v261 = vsel %vm244, %v233, 0
      %v264 = vsel %vm244, %v234, 0
      %v267 = vsel %vm244, %v235, 0
      %269 = vmatpush.msra.mxu0 0.0
      %270 = vmatpush.msra.mxu0 0.0
      %271 = vmatpush.msra.mxu0 0.0
      %272 = vmatpush.msra.mxu0 0.0
      %273 = vmatpush.msra.mxu0 0.0
      %274 = vmatpush.msra.mxu0 0.0
      %275 = vmatpush.msra.mxu0 0.0
      %276 = vmatpush.msra.mxu0 0.0
      %277 = vmatpush.msra.mxu0 0.0
      %278 = vmatpush.msra.mxu0 0.0
      %279 = vmatpush.msra.mxu0 0.0
      %280 = vmatpush.msra.mxu0 0.0
      %281 = vmatpush.msra.mxu0 %v239
      %282 = vmatpush.msra.mxu0 %v238
      %283 = vmatpush.msra.mxu0 %v237
      %284 = vmatpush.msra.mxu0 %v236
      %285 = vmatmul.f32.gmra.mxu0 %v246
      %v286 = vpop.f32.mrf.mxu0
      %v287 = vadd.f32 %v242, %v286
      %288 = vmatmul.f32.gmra.mxu0 %v249
      %v289 = vpop.f32.mrf.mxu0
      %v290 = vadd.f32 %v242, %v289
      %291 = vmatmul.f32.gmra.mxu0 %v252
      %v292 = vpop.f32.mrf.mxu0
      %v293 = vadd.f32 %v242, %v292
      %294 = vmatmul.f32.gmra.mxu0 %v255
      %v295 = vpop.f32.mrf.mxu0
      %v296 = vadd.f32 %v242, %v295
      %297 = vmatmul.f32.gmra.mxu0 %v258
      %v298 = vpop.f32.mrf.mxu0
      %v299 = vadd.f32 %v242, %v298
      %300 = vmatmul.f32.gmra.mxu0 %v261
      %v301 = vpop.f32.mrf.mxu0
      %v302 = vadd.f32 %v242, %v301
      %303 = vmatmul.f32.gmra.mxu0 %v264
      %v304 = vpop.f32.mrf.mxu0
      %v305 = vadd.f32 %v242, %v304
      %306 = vmatmul.f32.gmra.mxu0 %v267
      %v307 = vpop.f32.mrf.mxu0
      %v308 = vadd.f32 %v242, %v307
      %309 = vdwg.mxu0
      %312 = vrot.lane.b32.xlu0 %v287, 96
      %v313 = vpop.permute.xlu0 %312
      %314 = vrot.lane.b32.xlu0 %v290, 96
      %v315 = vpop.permute.xlu0 %314
      %vm316 = vcmask 64512
      %v317 = vsel %vm316, %v287, 0
      %v319 = vsel %vm316, %v290, 0
      %v321 = vsel %vm316, %v313, 0
      %v323 = vsel %vm316, %v315, 0
      %325 = vmatpush.xpose.msra.mxu0 0.0
      %326 = vmatpush.xpose.msra.mxu0 0.0
      %327 = vmatpush.xpose.msra.mxu0 0.0
      %328 = vmatpush.xpose.msra.mxu0 0.0
      %329 = vmatpush.xpose.msra.mxu0 0.0
      %330 = vmatpush.xpose.msra.mxu0 0.0
      %331 = vmatpush.xpose.msra.mxu0 0.0
      %332 = vmatpush.xpose.msra.mxu0 0.0
      %333 = vmatpush.xpose.msra.mxu0 0.0
      %334 = vmatpush.xpose.msra.mxu0 0.0
      %335 = vmatpush.xpose.msra.mxu0 0.0
      %336 = vmatpush.xpose.msra.mxu0 0.0
      %337 = vmatpush.xpose.msra.mxu0 0.0
      %338 = vmatpush.xpose.msra.mxu0 0.0
      %339 = vmatpush.xpose.msra.mxu0 %v323
      %340 = vmatpush.xpose.msra.mxu0 %v321
      %341 = vmatmul.f32.gmra.mxu0 %v317
      %v342 = vpop.f32.mrf.mxu0
      %v343 = vadd.f32 0.0, %v342
      %344 = vmatmul.f32.gmra.mxu0 %v319
      %v345 = vpop.f32.mrf.mxu0
      %v346 = vadd.f32 0.0, %v345
      %347 = vdwg.mxu0
      %350 = vrot.lane.b32.xlu0 %v293, 96
      %v351 = vpop.permute.xlu0 %350
      %352 = vrot.lane.b32.xlu0 %v296, 96
      %v353 = vpop.permute.xlu0 %352
      %v354 = vsel %vm316, %v293, 0
      %v356 = vsel %vm316, %v296, 0
      %v358 = vsel %vm316, %v351, 0
      %v360 = vsel %vm316, %v353, 0
      %362 = vmatpush.xpose.msra.mxu0 0.0
      %363 = vmatpush.xpose.msra.mxu0 0.0
      %364 = vmatpush.xpose.msra.mxu0 0.0
      %365 = vmatpush.xpose.msra.mxu0 0.0
      %366 = vmatpush.xpose.msra.mxu0 0.0
      %367 = vmatpush.xpose.msra.mxu0 0.0
      %368 = vmatpush.xpose.msra.mxu0 0.0
      %369 = vmatpush.xpose.msra.mxu0 0.0
      %370 = vmatpush.xpose.msra.mxu0 0.0
      %371 = vmatpush.xpose.msra.mxu0 0.0
      %372 = vmatpush.xpose.msra.mxu0 0.0
      %373 = vmatpush.xpose.msra.mxu0 0.0
      %374 = vmatpush.xpose.msra.mxu0 0.0
      %375 = vmatpush.xpose.msra.mxu0 0.0
      %376 = vmatpush.xpose.msra.mxu0 %v360
      %377 = vmatpush.xpose.msra.mxu0 %v358
      %378 = vmatmul.f32.gmra.mxu0 %v354
      %v379 = vpop.f32.mrf.mxu0
      %v380 = vadd.f32 0.0, %v379
      %381 = vmatmul.f32.gmra.mxu0 %v356
      %v382 = vpop.f32.mrf.mxu0
      %v383 = vadd.f32 0.0, %v382
      %384 = vdwg.mxu0
      %387 = vrot.lane.b32.xlu0 %v299, 96
      %v388 = vpop.permute.xlu0 %387
      %389 = vrot.lane.b32.xlu0 %v302, 96
      %v390 = vpop.permute.xlu0 %389
      %v391 = vsel %vm316, %v299, 0
      %v393 = vsel %vm316, %v302, 0
      %v395 = vsel %vm316, %v388, 0
      %v397 = vsel %vm316, %v390, 0
      %399 = vmatpush.xpose.msra.mxu0 0.0
      %400 = vmatpush.xpose.msra.mxu0 0.0
      %401 = vmatpush.xpose.msra.mxu0 0.0
      %402 = vmatpush.xpose.msra.mxu0 0.0
      %403 = vmatpush.xpose.msra.mxu0 0.0
      %404 = vmatpush.xpose.msra.mxu0 0.0
      %405 = vmatpush.xpose.msra.mxu0 0.0
      %406 = vmatpush.xpose.msra.mxu0 0.0
      %407 = vmatpush.xpose.msra.mxu0 0.0
      %408 = vmatpush.xpose.msra.mxu0 0.0
      %409 = vmatpush.xpose.msra.mxu0 0.0
      %410 = vmatpush.xpose.msra.mxu0 0.0
      %411 = vmatpush.xpose.msra.mxu0 0.0
      %412 = vmatpush.xpose.msra.mxu0 0.0
      %413 = vmatpush.xpose.msra.mxu0 %v397
      %414 = vmatpush.xpose.msra.mxu0 %v395
      %415 = vmatmul.f32.gmra.mxu0 %v391
      %v416 = vpop.f32.mrf.mxu0
      %v417 = vadd.f32 0.0, %v416
      %418 = vmatmul.f32.gmra.mxu0 %v393
      %v419 = vpop.f32.mrf.mxu0
      %v420 = vadd.f32 0.0, %v419
      %421 = vdwg.mxu0
      %424 = vrot.lane.b32.xlu0 %v305, 96
      %v425 = vpop.permute.xlu0 %424
      %426 = vrot.lane.b32.xlu0 %v308, 96
      %v427 = vpop.permute.xlu0 %426
      %v428 = vsel %vm316, %v305, 0
      %v430 = vsel %vm316, %v308, 0
      %v432 = vsel %vm316, %v425, 0
      %v434 = vsel %vm316, %v427, 0
      %436 = vmatpush.xpose.msra.mxu0 0.0
      %437 = vmatpush.xpose.msra.mxu0 0.0
      %438 = vmatpush.xpose.msra.mxu0 0.0
      %439 = vmatpush.xpose.msra.mxu0 0.0
      %440 = vmatpush.xpose.msra.mxu0 0.0
      %441 = vmatpush.xpose.msra.mxu0 0.0
      %442 = vmatpush.xpose.msra.mxu0 0.0
      %443 = vmatpush.xpose.msra.mxu0 0.0
      %444 = vmatpush.xpose.msra.mxu0 0.0
      %445 = vmatpush.xpose.msra.mxu0 0.0
      %446 = vmatpush.xpose.msra.mxu0 0.0
      %447 = vmatpush.xpose.msra.mxu0 0.0
      %448 = vmatpush.xpose.msra.mxu0 0.0
      %449 = vmatpush.xpose.msra.mxu0 0.0
      %450 = vmatpush.xpose.msra.mxu0 %v434
      %451 = vmatpush.xpose.msra.mxu0 %v432
      %452 = vmatmul.f32.gmra.mxu0 %v428
      %v453 = vpop.f32.mrf.mxu0
      %v454 = vadd.f32 0.0, %v453
      %455 = vmatmul.f32.gmra.mxu0 %v430
      %v456 = vpop.f32.mrf.mxu0
      %v457 = vadd.f32 0.0, %v456
      %458 = vdwg.mxu0
      %vm459 = vcmask 130048
      %v460 = vsel %vm459, %v343, -inf
      %461 = vmax.xlane.f32.xlu0 %v460
      %v462 = vpop.xlane.xlu0 %461
      %v463 = vsel %vm459, %v346, -inf
      %464 = vmax.xlane.f32.xlu0 %v463
      %v465 = vpop.xlane.xlu0 %464
      %v466 = vsel %vm459, %v380, -inf
      %467 = vmax.xlane.f32.xlu0 %v466
      %v468 = vpop.xlane.xlu0 %467
      %v469 = vsel %vm459, %v383, -inf
      %470 = vmax.xlane.f32.xlu0 %v469
      %v471 = vpop.xlane.xlu0 %470
      %v472 = vsel %vm459, %v417, -inf
      %473 = vmax.xlane.f32.xlu0 %v472
      %v474 = vpop.xlane.xlu0 %473
      %v475 = vsel %vm459, %v420, -inf
      %476 = vmax.xlane.f32.xlu0 %v475
      %v477 = vpop.xlane.xlu0 %476
      %v478 = vsel %vm459, %v454, -inf
      %479 = vmax.xlane.f32.xlu0 %v478
      %v480 = vpop.xlane.xlu0 %479
      %v481 = vsel %vm459, %v457, -inf
      %482 = vmax.xlane.f32.xlu0 %v481
      %v483 = vpop.xlane.xlu0 %482
      %v484 = vsub.f32 %v343, %v462
      %v485 = vsub.f32 %v346, %v465
      %v486 = vsub.f32 %v380, %v468
      %v487 = vsub.f32 %v383, %v471
      %v488 = vsub.f32 %v417, %v474
      %v489 = vsub.f32 %v420, %v477
      %v490 = vsub.f32 %v454, %v480
      %v491 = vsub.f32 %v457, %v483
      %v492 = vmul.f32 %v484, 1.442695
      %v493 = vpow.pop %v492
      %v494 = vmul.f32 %v485, 1.442695
      %v495 = vpow.pop %v494
      %v496 = vmul.f32 %v486, 1.442695
      %v497 = vpow.pop %v496
      %v498 = vmul.f32 %v487, 1.442695
      %v499 = vpow.pop %v498
      %v500 = vmul.f32 %v488, 1.442695
      %v501 = vpow.pop %v500
      %v502 = vmul.f32 %v489, 1.442695
      %v503 = vpow.pop %v502
      %v504 = vmul.f32 %v490, 1.442695
      %v505 = vpow.pop %v504
      %v506 = vmul.f32 %v491, 1.442695
      %v507 = vpow.pop %v506
      %v508 = vsel %vm459, %v493, 0.0
      %509 = vadd.xlane.f32.xlu0 %v508
      %v510 = vpop.xlane.xlu0 %509
      %v511 = vsel %vm459, %v495, 0.0
      %512 = vadd.xlane.f32.xlu0 %v511
      %v513 = vpop.xlane.xlu0 %512
      %v514 = vsel %vm459, %v497, 0.0
      %515 = vadd.xlane.f32.xlu0 %v514
      %v516 = vpop.xlane.xlu0 %515
      %v517 = vsel %vm459, %v499, 0.0
      %518 = vadd.xlane.f32.xlu0 %v517
      %v519 = vpop.xlane.xlu0 %518
      %v520 = vsel %vm459, %v501, 0.0
      %521 = vadd.xlane.f32.xlu0 %v520
      %v522 = vpop.xlane.xlu0 %521
      %v523 = vsel %vm459, %v503, 0.0
      %524 = vadd.xlane.f32.xlu0 %v523
      %v525 = vpop.xlane.xlu0 %524
      %v526 = vsel %vm459, %v505, 0.0
      %527 = vadd.xlane.f32.xlu0 %v526
      %v528 = vpop.xlane.xlu0 %527
      %v529 = vsel %vm459, %v507, 0.0
      %530 = vadd.xlane.f32.xlu0 %v529
      %v531 = vpop.xlane.xlu0 %530
      %v532 = vrcp.pop %v510
      %v533 = vrcp.pop %v513
      %v534 = vrcp.pop %v516
      %v535 = vrcp.pop %v519
      %v536 = vrcp.pop %v522
      %v537 = vrcp.pop %v525
      %v538 = vrcp.pop %v528
      %v539 = vrcp.pop %v531
      %540 = vrot.lane.b32.xlu0 %v287, 64
      %v541 = vpop.permute.xlu0 %540
      %542 = vrot.lane.b32.xlu0 %v290, 64
      %v543 = vpop.permute.xlu0 %542
      %v547 = vsel %vm459, %v493, 0
      %v550 = vsel %vm459, %v495, 0
      %552 = vmatpush.msra.mxu0 0.0
      %553 = vmatpush.msra.mxu0 0.0
      %554 = vmatpush.msra.mxu0 0.0
      %555 = vmatpush.msra.mxu0 0.0
      %556 = vmatpush.msra.mxu0 0.0
      %557 = vmatpush.msra.mxu0 0.0
      %558 = vmatpush.msra.mxu0 0.0
      %559 = vmatpush.msra.mxu0 0.0
      %560 = vmatpush.msra.mxu0 0.0
      %561 = vmatpush.msra.mxu0 0.0
      %562 = vmatpush.msra.mxu0 0.0
      %563 = vmatpush.msra.mxu0 0.0
      %564 = vmatpush.msra.mxu0 0.0
      %565 = vmatpush.msra.mxu0 0.0
      %566 = vmatpush.msra.mxu0 %v543
      %567 = vmatpush.msra.mxu0 %v541
      %568 = vmatmul.f32.gmra.mxu0 %v547
      %v569 = vpop.f32.mrf.mxu0
      %v570 = vadd.f32 0.0, %v569
      %571 = vmatmul.f32.gmra.mxu0 %v550
      %v572 = vpop.f32.mrf.mxu0
      %v573 = vadd.f32 0.0, %v572
      %574 = vdwg.mxu0
      %575 = vrot.lane.b32.xlu0 %v293, 64
      %v576 = vpop.permute.xlu0 %575
      %577 = vrot.lane.b32.xlu0 %v296, 64
      %v578 = vpop.permute.xlu0 %577
      %v582 = vsel %vm459, %v497, 0
      %v585 = vsel %vm459, %v499, 0
      %587 = vmatpush.msra.mxu0 0.0
      %588 = vmatpush.msra.mxu0 0.0
      %589 = vmatpush.msra.mxu0 0.0
      %590 = vmatpush.msra.mxu0 0.0
      %591 = vmatpush.msra.mxu0 0.0
      %592 = vmatpush.msra.mxu0 0.0
      %593 = vmatpush.msra.mxu0 0.0
      %594 = vmatpush.msra.mxu0 0.0
      %595 = vmatpush.msra.mxu0 0.0
      %596 = vmatpush.msra.mxu0 0.0
      %597 = vmatpush.msra.mxu0 0.0
      %598 = vmatpush.msra.mxu0 0.0
      %599 = vmatpush.msra.mxu0 0.0
      %600 = vmatpush.msra.mxu0 0.0
      %601 = vmatpush.msra.mxu0 %v578
      %602 = vmatpush.msra.mxu0 %v576
      %603 = vmatmul.f32.gmra.mxu0 %v582
      %v604 = vpop.f32.mrf.mxu0
      %v605 = vadd.f32 0.0, %v604
      %606 = vmatmul.f32.gmra.mxu0 %v585
      %v607 = vpop.f32.mrf.mxu0
      %v608 = vadd.f32 0.0, %v607
      %609 = vdwg.mxu0
      %610 = vrot.lane.b32.xlu0 %v299, 64
      %v611 = vpop.permute.xlu0 %610
      %612 = vrot.lane.b32.xlu0 %v302, 64
      %v613 = vpop.permute.xlu0 %612
      %v617 = vsel %vm459, %v501, 0
      %v620 = vsel %vm459, %v503, 0
      %622 = vmatpush.msra.mxu0 0.0
      %623 = vmatpush.msra.mxu0 0.0
      %624 = vmatpush.msra.mxu0 0.0
      %625 = vmatpush.msra.mxu0 0.0
      %626 = vmatpush.msra.mxu0 0.0
      %627 = vmatpush.msra.mxu0 0.0
      %628 = vmatpush.msra.mxu0 0.0
      %629 = vmatpush.msra.mxu0 0.0
      %630 = vmatpush.msra.mxu0 0.0
      %631 = vmatpush.msra.mxu0 0.0
      %632 = vmatpush.msra.mxu0 0.0
      %633 = vmatpush.msra.mxu0 0.0
      %634 = vmatpush.msra.mxu0 0.0
      %635 = vmatpush.msra.mxu0 0.0
      %636 = vmatpush.msra.mxu0 %v613
      %637 = vmatpush.msra.mxu0 %v611
      %638 = vmatmul.f32.gmra.mxu0 %v617
      %v639 = vpop.f32.mrf.mxu0
      %v640 = vadd.f32 0.0, %v639
      %641 = vmatmul.f32.gmra.mxu0 %v620
      %v642 = vpop.f32.mrf.mxu0
      %v643 = vadd.f32 0.0, %v642
      %644 = vdwg.mxu0
      %645 = vrot.lane.b32.xlu0 %v305, 64
      %v646 = vpop.permute.xlu0 %645
      %647 = vrot.lane.b32.xlu0 %v308, 64
      %v648 = vpop.permute.xlu0 %647
      %v652 = vsel %vm459, %v505, 0
      %v655 = vsel %vm459, %v507, 0
      %657 = vmatpush.msra.mxu0 0.0
      %658 = vmatpush.msra.mxu0 0.0
      %659 = vmatpush.msra.mxu0 0.0
      %660 = vmatpush.msra.mxu0 0.0
      %661 = vmatpush.msra.mxu0 0.0
      %662 = vmatpush.msra.mxu0 0.0
      %663 = vmatpush.msra.mxu0 0.0
      %664 = vmatpush.msra.mxu0 0.0
      %665 = vmatpush.msra.mxu0 0.0
      %666 = vmatpush.msra.mxu0 0.0
      %667 = vmatpush.msra.mxu0 0.0
      %668 = vmatpush.msra.mxu0 0.0
      %669 = vmatpush.msra.mxu0 0.0
      %670 = vmatpush.msra.mxu0 0.0
      %671 = vmatpush.msra.mxu0 %v648
      %672 = vmatpush.msra.mxu0 %v646
      %673 = vmatmul.f32.gmra.mxu0 %v652
      %v674 = vpop.f32.mrf.mxu0
      %v675 = vadd.f32 0.0, %v674
      %676 = vmatmul.f32.gmra.mxu0 %v655
      %v677 = vpop.f32.mrf.mxu0
      %v678 = vadd.f32 0.0, %v677
      %679 = vdwg.mxu0
      %v680 = vmul.f32 %v570, %v532
      %v681 = vmul.f32 %v573, %v533
      %v682 = vmul.f32 %v605, %v534
      %v683 = vmul.f32 %v608, %v535
      %v684 = vmul.f32 %v640, %v536
      %v685 = vmul.f32 %v643, %v537
      %v686 = vmul.f32 %v675, %v538
      %v687 = vmul.f32 %v678, %v539
      %688 = vst.msk [vmem:[#allocation2] sm:$0xff] %vm316, %v680
      %689 = vst.msk [vmem:[#allocation2 + $0x8] sm:$0xff] %vm316, %v681
      %690 = vst.msk [vmem:[#allocation2 + $0x10] sm:$0xff] %vm316, %v682
      %691 = vst.msk [vmem:[#allocation2 + $0x18] sm:$0xff] %vm316, %v683
      %692 = vst.msk [vmem:[#allocation2 + $0x20] sm:$0xff] %vm316, %v684
      %693 = vst.msk [vmem:[#allocation2 + $0x28] sm:$0xff] %vm316, %v685
      %694 = vst.msk [vmem:[#allocation2 + $0x30] sm:$0xff] %vm316, %v686
      %695 = vst.msk [vmem:[#allocation2 + $0x38] sm:$0xff] %vm316, %v687
      %696 = vrot.lane.b32.xlu0 %v287, 120
      %v697 = vpop.permute.xlu0 %696
      %698 = vrot.lane.b32.xlu0 %v290, 120
      %v699 = vpop.permute.xlu0 %698
      %700 = vrot.lane.b32.xlu0 %v287, 88
      %v701 = vpop.permute.xlu0 %700
      %702 = vrot.lane.b32.xlu0 %v290, 88
      %v703 = vpop.permute.xlu0 %702
      %v704 = vsel %vm316, %v697, 0
      %v706 = vsel %vm316, %v699, 0
      %v708 = vsel %vm316, %v701, 0
      %v710 = vsel %vm316, %v703, 0
      %712 = vmatpush.xpose.msra.mxu0 0.0
      %713 = vmatpush.xpose.msra.mxu0 0.0
      %714 = vmatpush.xpose.msra.mxu0 0.0
      %715 = vmatpush.xpose.msra.mxu0 0.0
      %716 = vmatpush.xpose.msra.mxu0 0.0
      %717 = vmatpush.xpose.msra.mxu0 0.0
      %718 = vmatpush.xpose.msra.mxu0 0.0
      %719 = vmatpush.xpose.msra.mxu0 0.0
      %720 = vmatpush.xpose.msra.mxu0 0.0
      %721 = vmatpush.xpose.msra.mxu0 0.0
      %722 = vmatpush.xpose.msra.mxu0 0.0
      %723 = vmatpush.xpose.msra.mxu0 0.0
      %724 = vmatpush.xpose.msra.mxu0 0.0
      %725 = vmatpush.xpose.msra.mxu0 0.0
      %726 = vmatpush.xpose.msra.mxu0 %v710
      %727 = vmatpush.xpose.msra.mxu0 %v708
      %728 = vmatmul.f32.gmra.mxu0 %v704
      %v729 = vpop.f32.mrf.mxu0
      %v730 = vadd.f32 0.0, %v729
      %731 = vmatmul.f32.gmra.mxu0 %v706
      %v732 = vpop.f32.mrf.mxu0
      %v733 = vadd.f32 0.0, %v732
      %734 = vdwg.mxu0
      %735 = vrot.lane.b32.xlu0 %v293, 120
      %v736 = vpop.permute.xlu0 %735
      %737 = vrot.lane.b32.xlu0 %v296, 120
      %v738 = vpop.permute.xlu0 %737
      %739 = vrot.lane.b32.xlu0 %v293, 88
      %v740 = vpop.permute.xlu0 %739
      %741 = vrot.lane.b32.xlu0 %v296, 88
      %v742 = vpop.permute.xlu0 %741
      %v743 = vsel %vm316, %v736, 0
      %v745 = vsel %vm316, %v738, 0
      %v747 = vsel %vm316, %v740, 0
      %v749 = vsel %vm316, %v742, 0
      %751 = vmatpush.xpose.msra.mxu0 0.0
      %752 = vmatpush.xpose.msra.mxu0 0.0
      %753 = vmatpush.xpose.msra.mxu0 0.0
      %754 = vmatpush.xpose.msra.mxu0 0.0
      %755 = vmatpush.xpose.msra.mxu0 0.0
      %756 = vmatpush.xpose.msra.mxu0 0.0
      %757 = vmatpush.xpose.msra.mxu0 0.0
      %758 = vmatpush.xpose.msra.mxu0 0.0
      %759 = vmatpush.xpose.msra.mxu0 0.0
      %760 = vmatpush.xpose.msra.mxu0 0.0
      %761 = vmatpush.xpose.msra.mxu0 0.0
      %762 = vmatpush.xpose.msra.mxu0 0.0
      %763 = vmatpush.xpose.msra.mxu0 0.0
      %764 = vmatpush.xpose.msra.mxu0 0.0
      %765 = vmatpush.xpose.msra.mxu0 %v749
      %766 = vmatpush.xpose.msra.mxu0 %v747
      %767 = vmatmul.f32.gmra.mxu0 %v743
      %v768 = vpop.f32.mrf.mxu0
      %v769 = vadd.f32 0.0, %v768
      %770 = vmatmul.f32.gmra.mxu0 %v745
      %v771 = vpop.f32.mrf.mxu0
      %v772 = vadd.f32 0.0, %v771
      %773 = vdwg.mxu0
      %774 = vrot.lane.b32.xlu0 %v299, 120
      %v775 = vpop.permute.xlu0 %774
      %776 = vrot.lane.b32.xlu0 %v302, 120
      %v777 = vpop.permute.xlu0 %776
      %778 = vrot.lane.b32.xlu0 %v299, 88
      %v779 = vpop.permute.xlu0 %778
      %780 = vrot.lane.b32.xlu0 %v302, 88
      %v781 = vpop.permute.xlu0 %780
      %v782 = vsel %vm316, %v775, 0
      %v784 = vsel %vm316, %v777, 0
      %v786 = vsel %vm316, %v779, 0
      %v788 = vsel %vm316, %v781, 0
      %790 = vmatpush.xpose.msra.mxu0 0.0
      %791 = vmatpush.xpose.msra.mxu0 0.0
      %792 = vmatpush.xpose.msra.mxu0 0.0
      %793 = vmatpush.xpose.msra.mxu0 0.0
      %794 = vmatpush.xpose.msra.mxu0 0.0
      %795 = vmatpush.xpose.msra.mxu0 0.0
      %796 = vmatpush.xpose.msra.mxu0 0.0
      %797 = vmatpush.xpose.msra.mxu0 0.0
      %798 = vmatpush.xpose.msra.mxu0 0.0
      %799 = vmatpush.xpose.msra.mxu0 0.0
      %800 = vmatpush.xpose.msra.mxu0 0.0
      %801 = vmatpush.xpose.msra.mxu0 0.0
      %802 = vmatpush.xpose.msra.mxu0 0.0
      %803 = vmatpush.xpose.msra.mxu0 0.0
      %804 = vmatpush.xpose.msra.mxu0 %v788
      %805 = vmatpush.xpose.msra.mxu0 %v786
      %806 = vmatmul.f32.gmra.mxu0 %v782
      %v807 = vpop.f32.mrf.mxu0
      %v808 = vadd.f32 0.0, %v807
      %809 = vmatmul.f32.gmra.mxu0 %v784
      %v810 = vpop.f32.mrf.mxu0
      %v811 = vadd.f32 0.0, %v810
      %812 = vdwg.mxu0
      %813 = vrot.lane.b32.xlu0 %v305, 120
      %v814 = vpop.permute.xlu0 %813
      %815 = vrot.lane.b32.xlu0 %v308, 120
      %v816 = vpop.permute.xlu0 %815
      %817 = vrot.lane.b32.xlu0 %v305, 88
      %v818 = vpop.permute.xlu0 %817
      %819 = vrot.lane.b32.xlu0 %v308, 88
      %v820 = vpop.permute.xlu0 %819
      %v821 = vsel %vm316, %v814, 0
      %v823 = vsel %vm316, %v816, 0
      %v825 = vsel %vm316, %v818, 0
      %v827 = vsel %vm316, %v820, 0
      %829 = vmatpush.xpose.msra.mxu0 0.0
      %830 = vmatpush.xpose.msra.mxu0 0.0
      %831 = vmatpush.xpose.msra.mxu0 0.0
      %832 = vmatpush.xpose.msra.mxu0 0.0
      %833 = vmatpush.xpose.msra.mxu0 0.0
      %834 = vmatpush.xpose.msra.mxu0 0.0
      %835 = vmatpush.xpose.msra.mxu0 0.0
      %836 = vmatpush.xpose.msra.mxu0 0.0
      %837 = vmatpush.xpose.msra.mxu0 0.0
      %838 = vmatpush.xpose.msra.mxu0 0.0
      %839 = vmatpush.xpose.msra.mxu0 0.0
      %840 = vmatpush.xpose.msra.mxu0 0.0
      %841 = vmatpush.xpose.msra.mxu0 0.0
      %842 = vmatpush.xpose.msra.mxu0 0.0
      %843 = vmatpush.xpose.msra.mxu0 %v827
      %844 = vmatpush.xpose.msra.mxu0 %v825
      %845 = vmatmul.f32.gmra.mxu0 %v821
      %v846 = vpop.f32.mrf.mxu0
      %v847 = vadd.f32 0.0, %v846
      %848 = vmatmul.f32.gmra.mxu0 %v823
      %v849 = vpop.f32.mrf.mxu0
      %v850 = vadd.f32 0.0, %v849
      %851 = vdwg.mxu0
      %v852 = vsel %vm459, %v730, -inf
      %853 = vmax.xlane.f32.xlu0 %v852
      %v854 = vpop.xlane.xlu0 %853
      %v855 = vsel %vm459, %v733, -inf
      %856 = vmax.xlane.f32.xlu0 %v855
      %v857 = vpop.xlane.xlu0 %856
      %v858 = vsel %vm459, %v769, -inf
      %859 = vmax.xlane.f32.xlu0 %v858
      %v860 = vpop.xlane.xlu0 %859
      %v861 = vsel %vm459, %v772, -inf
      %862 = vmax.xlane.f32.xlu0 %v861
      %v863 = vpop.xlane.xlu0 %862
      %v864 = vsel %vm459, %v808, -inf
      %865 = vmax.xlane.f32.xlu0 %v864
      %v866 = vpop.xlane.xlu0 %865
      %v867 = vsel %vm459, %v811, -inf
      %868 = vmax.xlane.f32.xlu0 %v867
      %v869 = vpop.xlane.xlu0 %868
      %v870 = vsel %vm459, %v847, -inf
      %871 = vmax.xlane.f32.xlu0 %v870
      %v872 = vpop.xlane.xlu0 %871
      %v873 = vsel %vm459, %v850, -inf
      %874 = vmax.xlane.f32.xlu0 %v873
      %v875 = vpop.xlane.xlu0 %874
      %v876 = vsub.f32 %v730, %v854
      %v877 = vsub.f32 %v733, %v857
      %v878 = vsub.f32 %v769, %v860
      %v879 = vsub.f32 %v772, %v863
      %v880 = vsub.f32 %v808, %v866
      %v881 = vsub.f32 %v811, %v869
      %v882 = vsub.f32 %v847, %v872
      %v883 = vsub.f32 %v850, %v875
      %v884 = vmul.f32 %v876, 1.442695
      %v885 = vpow.pop %v884
      %v886 = vmul.f32 %v877, 1.442695
      %v887 = vpow.pop %v886
      %v888 = vmul.f32 %v878, 1.442695
      %v889 = vpow.pop %v888
      %v890 = vmul.f32 %v879, 1.442695
      %v891 = vpow.pop %v890
      %v892 = vmul.f32 %v880, 1.442695
      %v893 = vpow.pop %v892
      %v894 = vmul.f32 %v881, 1.442695
      %v895 = vpow.pop %v894
      %v896 = vmul.f32 %v882, 1.442695
      %v897 = vpow.pop %v896
      %v898 = vmul.f32 %v883, 1.442695
      %v899 = vpow.pop %v898
      %v900 = vsel %vm459, %v885, 0.0
      %901 = vadd.xlane.f32.xlu0 %v900
      %v902 = vpop.xlane.xlu0 %901
      %v903 = vsel %vm459, %v887, 0.0
      %904 = vadd.xlane.f32.xlu0 %v903
      %v905 = vpop.xlane.xlu0 %904
      %v906 = vsel %vm459, %v889, 0.0
      %907 = vadd.xlane.f32.xlu0 %v906
      %v908 = vpop.xlane.xlu0 %907
      %v909 = vsel %vm459, %v891, 0.0
      %910 = vadd.xlane.f32.xlu0 %v909
      %v911 = vpop.xlane.xlu0 %910
      %v912 = vsel %vm459, %v893, 0.0
      %913 = vadd.xlane.f32.xlu0 %v912
      %v914 = vpop.xlane.xlu0 %913
      %v915 = vsel %vm459, %v895, 0.0
      %916 = vadd.xlane.f32.xlu0 %v915
      %v917 = vpop.xlane.xlu0 %916
      %v918 = vsel %vm459, %v897, 0.0
      %919 = vadd.xlane.f32.xlu0 %v918
      %v920 = vpop.xlane.xlu0 %919
      %v921 = vsel %vm459, %v899, 0.0
      %922 = vadd.xlane.f32.xlu0 %v921
      %v923 = vpop.xlane.xlu0 %922
      %v924 = vrcp.pop %v902
      %v925 = vrcp.pop %v905
      %v926 = vrcp.pop %v908
      %v927 = vrcp.pop %v911
      %v928 = vrcp.pop %v914
      %v929 = vrcp.pop %v917
      %v930 = vrcp.pop %v920
      %v931 = vrcp.pop %v923
      %932 = vrot.lane.b32.xlu0 %v287, 56
      %v933 = vpop.permute.xlu0 %932
      %934 = vrot.lane.b32.xlu0 %v290, 56
      %v935 = vpop.permute.xlu0 %934
      %v939 = vsel %vm459, %v885, 0
      %v942 = vsel %vm459, %v887, 0
      %944 = vmatpush.msra.mxu0 0.0
      %945 = vmatpush.msra.mxu0 0.0
      %946 = vmatpush.msra.mxu0 0.0
      %947 = vmatpush.msra.mxu0 0.0
      %948 = vmatpush.msra.mxu0 0.0
      %949 = vmatpush.msra.mxu0 0.0
      %950 = vmatpush.msra.mxu0 0.0
      %951 = vmatpush.msra.mxu0 0.0
      %952 = vmatpush.msra.mxu0 0.0
      %953 = vmatpush.msra.mxu0 0.0
      %954 = vmatpush.msra.mxu0 0.0
      %955 = vmatpush.msra.mxu0 0.0
      %956 = vmatpush.msra.mxu0 0.0
      %957 = vmatpush.msra.mxu0 0.0
      %958 = vmatpush.msra.mxu0 %v935
      %959 = vmatpush.msra.mxu0 %v933
      %960 = vmatmul.f32.gmra.mxu0 %v939
      %v961 = vpop.f32.mrf.mxu0
      %v962 = vadd.f32 0.0, %v961
      %963 = vmatmul.f32.gmra.mxu0 %v942
      %v964 = vpop.f32.mrf.mxu0
      %v965 = vadd.f32 0.0, %v964
      %966 = vdwg.mxu0
      %967 = vrot.lane.b32.xlu0 %v293, 56
      %v968 = vpop.permute.xlu0 %967
      %969 = vrot.lane.b32.xlu0 %v296, 56
      %v970 = vpop.permute.xlu0 %969
      %v974 = vsel %vm459, %v889, 0
      %v977 = vsel %vm459, %v891, 0
      %979 = vmatpush.msra.mxu0 0.0
      %980 = vmatpush.msra.mxu0 0.0
      %981 = vmatpush.msra.mxu0 0.0
      %982 = vmatpush.msra.mxu0 0.0
      %983 = vmatpush.msra.mxu0 0.0
      %984 = vmatpush.msra.mxu0 0.0
      %985 = vmatpush.msra.mxu0 0.0
      %986 = vmatpush.msra.mxu0 0.0
      %987 = vmatpush.msra.mxu0 0.0
      %988 = vmatpush.msra.mxu0 0.0
      %989 = vmatpush.msra.mxu0 0.0
      %990 = vmatpush.msra.mxu0 0.0
      %991 = vmatpush.msra.mxu0 0.0
      %992 = vmatpush.msra.mxu0 0.0
      %993 = vmatpush.msra.mxu0 %v970
      %994 = vmatpush.msra.mxu0 %v968
      %995 = vmatmul.f32.gmra.mxu0 %v974
      %v996 = vpop.f32.mrf.mxu0
      %v997 = vadd.f32 0.0, %v996
      %998 = vmatmul.f32.gmra.mxu0 %v977
      %v999 = vpop.f32.mrf.mxu0
      %v1000 = vadd.f32 0.0, %v999
      %1001 = vdwg.mxu0
      %1002 = vrot.lane.b32.xlu0 %v299, 56
      %v1003 = vpop.permute.xlu0 %1002
      %1004 = vrot.lane.b32.xlu0 %v302, 56
      %v1005 = vpop.permute.xlu0 %1004
      %v1009 = vsel %vm459, %v893, 0
      %v1012 = vsel %vm459, %v895, 0
      %1014 = vmatpush.msra.mxu0 0.0
      %1015 = vmatpush.msra.mxu0 0.0
      %1016 = vmatpush.msra.mxu0 0.0
      %1017 = vmatpush.msra.mxu0 0.0
      %1018 = vmatpush.msra.mxu0 0.0
      %1019 = vmatpush.msra.mxu0 0.0
      %1020 = vmatpush.msra.mxu0 0.0
      %1021 = vmatpush.msra.mxu0 0.0
      %1022 = vmatpush.msra.mxu0 0.0
      %1023 = vmatpush.msra.mxu0 0.0
      %1024 = vmatpush.msra.mxu0 0.0
      %1025 = vmatpush.msra.mxu0 0.0
      %1026 = vmatpush.msra.mxu0 0.0
      %1027 = vmatpush.msra.mxu0 0.0
      %1028 = vmatpush.msra.mxu0 %v1005
      %1029 = vmatpush.msra.mxu0 %v1003
      %1030 = vmatmul.f32.gmra.mxu0 %v1009
      %v1031 = vpop.f32.mrf.mxu0
      %v1032 = vadd.f32 0.0, %v1031
      %1033 = vmatmul.f32.gmra.mxu0 %v1012
      %v1034 = vpop.f32.mrf.mxu0
      %v1035 = vadd.f32 0.0, %v1034
      %1036 = vdwg.mxu0
      %1037 = vrot.lane.b32.xlu0 %v305, 56
      %v1038 = vpop.permute.xlu0 %1037
      %1039 = vrot.lane.b32.xlu0 %v308, 56
      %v1040 = vpop.permute.xlu0 %1039
      %v1044 = vsel %vm459, %v897, 0
      %v1047 = vsel %vm459, %v899, 0
      %1049 = vmatpush.msra.mxu0 0.0
      %1050 = vmatpush.msra.mxu0 0.0
      %1051 = vmatpush.msra.mxu0 0.0
      %1052 = vmatpush.msra.mxu0 0.0
      %1053 = vmatpush.msra.mxu0 0.0
      %1054 = vmatpush.msra.mxu0 0.0
      %1055 = vmatpush.msra.mxu0 0.0
      %1056 = vmatpush.msra.mxu0 0.0
      %1057 = vmatpush.msra.mxu0 0.0
      %1058 = vmatpush.msra.mxu0 0.0
      %1059 = vmatpush.msra.mxu0 0.0
      %1060 = vmatpush.msra.mxu0 0.0
      %1061 = vmatpush.msra.mxu0 0.0
      %1062 = vmatpush.msra.mxu0 0.0
      %1063 = vmatpush.msra.mxu0 %v1040
      %1064 = vmatpush.msra.mxu0 %v1038
      %1065 = vmatmul.f32.gmra.mxu0 %v1044
      %v1066 = vpop.f32.mrf.mxu0
      %v1067 = vadd.f32 0.0, %v1066
      %1068 = vmatmul.f32.gmra.mxu0 %v1047
      %v1069 = vpop.f32.mrf.mxu0
      %v1070 = vadd.f32 0.0, %v1069
      %1071 = vdwg.mxu0
      %v1072 = vmul.f32 %v962, %v924
      %v1073 = vmul.f32 %v965, %v925
      %v1074 = vmul.f32 %v997, %v926
      %v1075 = vmul.f32 %v1000, %v927
      %v1076 = vmul.f32 %v1032, %v928
      %v1077 = vmul.f32 %v1035, %v929
      %v1078 = vmul.f32 %v1067, %v930
      %v1079 = vmul.f32 %v1070, %v931
      %1088 = vrot.lane.b32.xlu0 %v1072, 8
      %v1089 = vpop.permute.xlu0 %1088
      %1090 = vrot.lane.b32.xlu0 %v1073, 8
      %v1091 = vpop.permute.xlu0 %1090
      %1092 = vrot.lane.b32.xlu0 %v1074, 8
      %v1093 = vpop.permute.xlu0 %1092
      %1094 = vrot.lane.b32.xlu0 %v1075, 8
      %v1095 = vpop.permute.xlu0 %1094
      %1096 = vrot.lane.b32.xlu0 %v1076, 8
      %v1097 = vpop.permute.xlu0 %1096
      %1098 = vrot.lane.b32.xlu0 %v1077, 8
      %v1099 = vpop.permute.xlu0 %1098
      %1100 = vrot.lane.b32.xlu0 %v1078, 8
      %v1101 = vpop.permute.xlu0 %1100
      %1102 = vrot.lane.b32.xlu0 %v1079, 8
      %v1103 = vpop.permute.xlu0 %1102
      %vm1112 = vcmask 130112
      %1113 = vst.msk [vmem:[#allocation2] sm:$0xff] %vm1112, %v1089
      %1114 = vst.msk [vmem:[#allocation2 + $0x8] sm:$0xff] %vm1112, %v1091
      %1115 = vst.msk [vmem:[#allocation2 + $0x10] sm:$0xff] %vm1112, %v1093
      %1116 = vst.msk [vmem:[#allocation2 + $0x18] sm:$0xff] %vm1112, %v1095
      %1117 = vst.msk [vmem:[#allocation2 + $0x20] sm:$0xff] %vm1112, %v1097
      %1118 = vst.msk [vmem:[#allocation2 + $0x28] sm:$0xff] %vm1112, %v1099
      %1119 = vst.msk [vmem:[#allocation2 + $0x30] sm:$0xff] %vm1112, %v1101
      %1120 = vst.msk [vmem:[#allocation2 + $0x38] sm:$0xff] %vm1112, %v1103
      %1121 = vrot.lane.b32.xlu0 %v287, 112
      %v1122 = vpop.permute.xlu0 %1121
      %1123 = vrot.lane.b32.xlu0 %v290, 112
      %v1124 = vpop.permute.xlu0 %1123
      %1125 = vrot.lane.b32.xlu0 %v287, 80
      %v1126 = vpop.permute.xlu0 %1125
      %1127 = vrot.lane.b32.xlu0 %v290, 80
      %v1128 = vpop.permute.xlu0 %1127
      %v1129 = vsel %vm316, %v1122, 0
      %v1131 = vsel %vm316, %v1124, 0
      %v1133 = vsel %vm316, %v1126, 0
      %v1135 = vsel %vm316, %v1128, 0
      %1137 = vmatpush.xpose.msra.mxu0 0.0
      %1138 = vmatpush.xpose.msra.mxu0 0.0
      %1139 = vmatpush.xpose.msra.mxu0 0.0
      %1140 = vmatpush.xpose.msra.mxu0 0.0
      %1141 = vmatpush.xpose.msra.mxu0 0.0
      %1142 = vmatpush.xpose.msra.mxu0 0.0
      %1143 = vmatpush.xpose.msra.mxu0 0.0
      %1144 = vmatpush.xpose.msra.mxu0 0.0
      %1145 = vmatpush.xpose.msra.mxu0 0.0
      %1146 = vmatpush.xpose.msra.mxu0 0.0
      %1147 = vmatpush.xpose.msra.mxu0 0.0
      %1148 = vmatpush.xpose.msra.mxu0 0.0
      %1149 = vmatpush.xpose.msra.mxu0 0.0
      %1150 = vmatpush.xpose.msra.mxu0 0.0
      %1151 = vmatpush.xpose.msra.mxu0 %v1135
      %1152 = vmatpush.xpose.msra.mxu0 %v1133
      %1153 = vmatmul.f32.gmra.mxu0 %v1129
      %v1154 = vpop.f32.mrf.mxu0
      %v1155 = vadd.f32 0.0, %v1154
      %1156 = vmatmul.f32.gmra.mxu0 %v1131
      %v1157 = vpop.f32.mrf.mxu0
      %v1158 = vadd.f32 0.0, %v1157
      %1159 = vdwg.mxu0
      %1160 = vrot.lane.b32.xlu0 %v293, 112
      %v1161 = vpop.permute.xlu0 %1160
      %1162 = vrot.lane.b32.xlu0 %v296, 112
      %v1163 = vpop.permute.xlu0 %1162
      %1164 = vrot.lane.b32.xlu0 %v293, 80
      %v1165 = vpop.permute.xlu0 %1164
      %1166 = vrot.lane.b32.xlu0 %v296, 80
      %v1167 = vpop.permute.xlu0 %1166
      %v1168 = vsel %vm316, %v1161, 0
      %v1170 = vsel %vm316, %v1163, 0
      %v1172 = vsel %vm316, %v1165, 0
      %v1174 = vsel %vm316, %v1167, 0
      %1176 = vmatpush.xpose.msra.mxu0 0.0
      %1177 = vmatpush.xpose.msra.mxu0 0.0
      %1178 = vmatpush.xpose.msra.mxu0 0.0
      %1179 = vmatpush.xpose.msra.mxu0 0.0
      %1180 = vmatpush.xpose.msra.mxu0 0.0
      %1181 = vmatpush.xpose.msra.mxu0 0.0
      %1182 = vmatpush.xpose.msra.mxu0 0.0
      %1183 = vmatpush.xpose.msra.mxu0 0.0
      %1184 = vmatpush.xpose.msra.mxu0 0.0
      %1185 = vmatpush.xpose.msra.mxu0 0.0
      %1186 = vmatpush.xpose.msra.mxu0 0.0
      %1187 = vmatpush.xpose.msra.mxu0 0.0
      %1188 = vmatpush.xpose.msra.mxu0 0.0
      %1189 = vmatpush.xpose.msra.mxu0 0.0
      %1190 = vmatpush.xpose.msra.mxu0 %v1174
      %1191 = vmatpush.xpose.msra.mxu0 %v1172
      %1192 = vmatmul.f32.gmra.mxu0 %v1168
      %v1193 = vpop.f32.mrf.mxu0
      %v1194 = vadd.f32 0.0, %v1193
      %1195 = vmatmul.f32.gmra.mxu0 %v1170
      %v1196 = vpop.f32.mrf.mxu0
      %v1197 = vadd.f32 0.0, %v1196
      %1198 = vdwg.mxu0
      %1199 = vrot.lane.b32.xlu0 %v299, 112
      %v1200 = vpop.permute.xlu0 %1199
      %1201 = vrot.lane.b32.xlu0 %v302, 112
      %v1202 = vpop.permute.xlu0 %1201
      %1203 = vrot.lane.b32.xlu0 %v299, 80
      %v1204 = vpop.permute.xlu0 %1203
      %1205 = vrot.lane.b32.xlu0 %v302, 80
      %v1206 = vpop.permute.xlu0 %1205
      %v1207 = vsel %vm316, %v1200, 0
      %v1209 = vsel %vm316, %v1202, 0
      %v1211 = vsel %vm316, %v1204, 0
      %v1213 = vsel %vm316, %v1206, 0
      %1215 = vmatpush.xpose.msra.mxu0 0.0
      %1216 = vmatpush.xpose.msra.mxu0 0.0
      %1217 = vmatpush.xpose.msra.mxu0 0.0
      %1218 = vmatpush.xpose.msra.mxu0 0.0
      %1219 = vmatpush.xpose.msra.mxu0 0.0
      %1220 = vmatpush.xpose.msra.mxu0 0.0
      %1221 = vmatpush.xpose.msra.mxu0 0.0
      %1222 = vmatpush.xpose.msra.mxu0 0.0
      %1223 = vmatpush.xpose.msra.mxu0 0.0
      %1224 = vmatpush.xpose.msra.mxu0 0.0
      %1225 = vmatpush.xpose.msra.mxu0 0.0
      %1226 = vmatpush.xpose.msra.mxu0 0.0
      %1227 = vmatpush.xpose.msra.mxu0 0.0
      %1228 = vmatpush.xpose.msra.mxu0 0.0
      %1229 = vmatpush.xpose.msra.mxu0 %v1213
      %1230 = vmatpush.xpose.msra.mxu0 %v1211
      %1231 = vmatmul.f32.gmra.mxu0 %v1207
      %v1232 = vpop.f32.mrf.mxu0
      %v1233 = vadd.f32 0.0, %v1232
      %1234 = vmatmul.f32.gmra.mxu0 %v1209
      %v1235 = vpop.f32.mrf.mxu0
      %v1236 = vadd.f32 0.0, %v1235
      %1237 = vdwg.mxu0
      %1238 = vrot.lane.b32.xlu0 %v305, 112
      %v1239 = vpop.permute.xlu0 %1238
      %1240 = vrot.lane.b32.xlu0 %v308, 112
      %v1241 = vpop.permute.xlu0 %1240
      %1242 = vrot.lane.b32.xlu0 %v305, 80
      %v1243 = vpop.permute.xlu0 %1242
      %1244 = vrot.lane.b32.xlu0 %v308, 80
      %v1245 = vpop.permute.xlu0 %1244
      %v1246 = vsel %vm316, %v1239, 0
      %v1248 = vsel %vm316, %v1241, 0
      %v1250 = vsel %vm316, %v1243, 0
      %v1252 = vsel %vm316, %v1245, 0
      %1254 = vmatpush.xpose.msra.mxu0 0.0
      %1255 = vmatpush.xpose.msra.mxu0 0.0
      %1256 = vmatpush.xpose.msra.mxu0 0.0
      %1257 = vmatpush.xpose.msra.mxu0 0.0
      %1258 = vmatpush.xpose.msra.mxu0 0.0
      %1259 = vmatpush.xpose.msra.mxu0 0.0
      %1260 = vmatpush.xpose.msra.mxu0 0.0
      %1261 = vmatpush.xpose.msra.mxu0 0.0
      %1262 = vmatpush.xpose.msra.mxu0 0.0
      %1263 = vmatpush.xpose.msra.mxu0 0.0
      %1264 = vmatpush.xpose.msra.mxu0 0.0
      %1265 = vmatpush.xpose.msra.mxu0 0.0
      %1266 = vmatpush.xpose.msra.mxu0 0.0
      %1267 = vmatpush.xpose.msra.mxu0 0.0
      %1268 = vmatpush.xpose.msra.mxu0 %v1252
      %1269 = vmatpush.xpose.msra.mxu0 %v1250
      %1270 = vmatmul.f32.gmra.mxu0 %v1246
      %v1271 = vpop.f32.mrf.mxu0
      %v1272 = vadd.f32 0.0, %v1271
      %1273 = vmatmul.f32.gmra.mxu0 %v1248
      %v1274 = vpop.f32.mrf.mxu0
      %v1275 = vadd.f32 0.0, %v1274
      %1276 = vdwg.mxu0
      %v1277 = vsel %vm459, %v1155, -inf
      %1278 = vmax.xlane.f32.xlu0 %v1277
      %v1279 = vpop.xlane.xlu0 %1278
      %v1280 = vsel %vm459, %v1158, -inf
      %1281 = vmax.xlane.f32.xlu0 %v1280
      %v1282 = vpop.xlane.xlu0 %1281
      %v1283 = vsel %vm459, %v1194, -inf
      %1284 = vmax.xlane.f32.xlu0 %v1283
      %v1285 = vpop.xlane.xlu0 %1284
      %v1286 = vsel %vm459, %v1197, -inf
      %1287 = vmax.xlane.f32.xlu0 %v1286
      %v1288 = vpop.xlane.xlu0 %1287
      %v1289 = vsel %vm459, %v1233, -inf
      %1290 = vmax.xlane.f32.xlu0 %v1289
      %v1291 = vpop.xlane.xlu0 %1290
      %v1292 = vsel %vm459, %v1236, -inf
      %1293 = vmax.xlane.f32.xlu0 %v1292
      %v1294 = vpop.xlane.xlu0 %1293
      %v1295 = vsel %vm459, %v1272, -inf
      %1296 = vmax.xlane.f32.xlu0 %v1295
      %v1297 = vpop.xlane.xlu0 %1296
      %v1298 = vsel %vm459, %v1275, -inf
      %1299 = vmax.xlane.f32.xlu0 %v1298
      %v1300 = vpop.xlane.xlu0 %1299
      %v1301 = vsub.f32 %v1155, %v1279
      %v1302 = vsub.f32 %v1158, %v1282
      %v1303 = vsub.f32 %v1194, %v1285
      %v1304 = vsub.f32 %v1197, %v1288
      %v1305 = vsub.f32 %v1233, %v1291
      %v1306 = vsub.f32 %v1236, %v1294
      %v1307 = vsub.f32 %v1272, %v1297
      %v1308 = vsub.f32 %v1275, %v1300
      %v1309 = vmul.f32 %v1301, 1.442695
      %v1310 = vpow.pop %v1309
      %v1311 = vmul.f32 %v1302, 1.442695
      %v1312 = vpow.pop %v1311
      %v1313 = vmul.f32 %v1303, 1.442695
      %v1314 = vpow.pop %v1313
      %v1315 = vmul.f32 %v1304, 1.442695
      %v1316 = vpow.pop %v1315
      %v1317 = vmul.f32 %v1305, 1.442695
      %v1318 = vpow.pop %v1317
      %v1319 = vmul.f32 %v1306, 1.442695
      %v1320 = vpow.pop %v1319
      %v1321 = vmul.f32 %v1307, 1.442695
      %v1322 = vpow.pop %v1321
      %v1323 = vmul.f32 %v1308, 1.442695
      %v1324 = vpow.pop %v1323
      %v1325 = vsel %vm459, %v1310, 0.0
      %1326 = vadd.xlane.f32.xlu0 %v1325
      %v1327 = vpop.xlane.xlu0 %1326
      %v1328 = vsel %vm459, %v1312, 0.0
      %1329 = vadd.xlane.f32.xlu0 %v1328
      %v1330 = vpop.xlane.xlu0 %1329
      %v1331 = vsel %vm459, %v1314, 0.0
      %1332 = vadd.xlane.f32.xlu0 %v1331
      %v1333 = vpop.xlane.xlu0 %1332
      %v1334 = vsel %vm459, %v1316, 0.0
      %1335 = vadd.xlane.f32.xlu0 %v1334
      %v1336 = vpop.xlane.xlu0 %1335
      %v1337 = vsel %vm459, %v1318, 0.0
      %1338 = vadd.xlane.f32.xlu0 %v1337
      %v1339 = vpop.xlane.xlu0 %1338
      %v1340 = vsel %vm459, %v1320, 0.0
      %1341 = vadd.xlane.f32.xlu0 %v1340
      %v1342 = vpop.xlane.xlu0 %1341
      %v1343 = vsel %vm459, %v1322, 0.0
      %1344 = vadd.xlane.f32.xlu0 %v1343
      %v1345 = vpop.xlane.xlu0 %1344
      %v1346 = vsel %vm459, %v1324, 0.0
      %1347 = vadd.xlane.f32.xlu0 %v1346
      %v1348 = vpop.xlane.xlu0 %1347
      %v1349 = vrcp.pop %v1327
      %v1350 = vrcp.pop %v1330
      %v1351 = vrcp.pop %v1333
      %v1352 = vrcp.pop %v1336
      %v1353 = vrcp.pop %v1339
      %v1354 = vrcp.pop %v1342
      %v1355 = vrcp.pop %v1345
      %v1356 = vrcp.pop %v1348
      %1357 = vrot.lane.b32.xlu0 %v287, 48
      %v1358 = vpop.permute.xlu0 %1357
      %1359 = vrot.lane.b32.xlu0 %v290, 48
      %v1360 = vpop.permute.xlu0 %1359
      %v1364 = vsel %vm459, %v1310, 0
      %v1367 = vsel %vm459, %v1312, 0
      %1369 = vmatpush.msra.mxu0 0.0
      %1370 = vmatpush.msra.mxu0 0.0
      %1371 = vmatpush.msra.mxu0 0.0
      %1372 = vmatpush.msra.mxu0 0.0
      %1373 = vmatpush.msra.mxu0 0.0
      %1374 = vmatpush.msra.mxu0 0.0
      %1375 = vmatpush.msra.mxu0 0.0
      %1376 = vmatpush.msra.mxu0 0.0
      %1377 = vmatpush.msra.mxu0 0.0
      %1378 = vmatpush.msra.mxu0 0.0
      %1379 = vmatpush.msra.mxu0 0.0
      %1380 = vmatpush.msra.mxu0 0.0
      %1381 = vmatpush.msra.mxu0 0.0
      %1382 = vmatpush.msra.mxu0 0.0
      %1383 = vmatpush.msra.mxu0 %v1360
      %1384 = vmatpush.msra.mxu0 %v1358
      %1385 = vmatmul.f32.gmra.mxu0 %v1364
      %v1386 = vpop.f32.mrf.mxu0
      %v1387 = vadd.f32 0.0, %v1386
      %1388 = vmatmul.f32.gmra.mxu0 %v1367
      %v1389 = vpop.f32.mrf.mxu0
      %v1390 = vadd.f32 0.0, %v1389
      %1391 = vdwg.mxu0
      %1392 = vrot.lane.b32.xlu0 %v293, 48
      %v1393 = vpop.permute.xlu0 %1392
      %1394 = vrot.lane.b32.xlu0 %v296, 48
      %v1395 = vpop.permute.xlu0 %1394
      %v1399 = vsel %vm459, %v1314, 0
      %v1402 = vsel %vm459, %v1316, 0
      %1404 = vmatpush.msra.mxu0 0.0
      %1405 = vmatpush.msra.mxu0 0.0
      %1406 = vmatpush.msra.mxu0 0.0
      %1407 = vmatpush.msra.mxu0 0.0
      %1408 = vmatpush.msra.mxu0 0.0
      %1409 = vmatpush.msra.mxu0 0.0
      %1410 = vmatpush.msra.mxu0 0.0
      %1411 = vmatpush.msra.mxu0 0.0
      %1412 = vmatpush.msra.mxu0 0.0
      %1413 = vmatpush.msra.mxu0 0.0
      %1414 = vmatpush.msra.mxu0 0.0
      %1415 = vmatpush.msra.mxu0 0.0
      %1416 = vmatpush.msra.mxu0 0.0
      %1417 = vmatpush.msra.mxu0 0.0
      %1418 = vmatpush.msra.mxu0 %v1395
      %1419 = vmatpush.msra.mxu0 %v1393
      %1420 = vmatmul.f32.gmra.mxu0 %v1399
      %v1421 = vpop.f32.mrf.mxu0
      %v1422 = vadd.f32 0.0, %v1421
      %1423 = vmatmul.f32.gmra.mxu0 %v1402
      %v1424 = vpop.f32.mrf.mxu0
      %v1425 = vadd.f32 0.0, %v1424
      %1426 = vdwg.mxu0
      %1427 = vrot.lane.b32.xlu0 %v299, 48
      %v1428 = vpop.permute.xlu0 %1427
      %1429 = vrot.lane.b32.xlu0 %v302, 48
      %v1430 = vpop.permute.xlu0 %1429
      %v1434 = vsel %vm459, %v1318, 0
      %v1437 = vsel %vm459, %v1320, 0
      %1439 = vmatpush.msra.mxu0 0.0
      %1440 = vmatpush.msra.mxu0 0.0
      %1441 = vmatpush.msra.mxu0 0.0
      %1442 = vmatpush.msra.mxu0 0.0
      %1443 = vmatpush.msra.mxu0 0.0
      %1444 = vmatpush.msra.mxu0 0.0
      %1445 = vmatpush.msra.mxu0 0.0
      %1446 = vmatpush.msra.mxu0 0.0
      %1447 = vmatpush.msra.mxu0 0.0
      %1448 = vmatpush.msra.mxu0 0.0
      %1449 = vmatpush.msra.mxu0 0.0
      %1450 = vmatpush.msra.mxu0 0.0
      %1451 = vmatpush.msra.mxu0 0.0
      %1452 = vmatpush.msra.mxu0 0.0
      %1453 = vmatpush.msra.mxu0 %v1430
      %1454 = vmatpush.msra.mxu0 %v1428
      %1455 = vmatmul.f32.gmra.mxu0 %v1434
      %v1456 = vpop.f32.mrf.mxu0
      %v1457 = vadd.f32 0.0, %v1456
      %1458 = vmatmul.f32.gmra.mxu0 %v1437
      %v1459 = vpop.f32.mrf.mxu0
      %v1460 = vadd.f32 0.0, %v1459
      %1461 = vdwg.mxu0
      %1462 = vrot.lane.b32.xlu0 %v305, 48
      %v1463 = vpop.permute.xlu0 %1462
      %1464 = vrot.lane.b32.xlu0 %v308, 48
      %v1465 = vpop.permute.xlu0 %1464
      %v1469 = vsel %vm459, %v1322, 0
      %v1472 = vsel %vm459, %v1324, 0
      %1474 = vmatpush.msra.mxu0 0.0
      %1475 = vmatpush.msra.mxu0 0.0
      %1476 = vmatpush.msra.mxu0 0.0
      %1477 = vmatpush.msra.mxu0 0.0
      %1478 = vmatpush.msra.mxu0 0.0
      %1479 = vmatpush.msra.mxu0 0.0
      %1480 = vmatpush.msra.mxu0 0.0
      %1481 = vmatpush.msra.mxu0 0.0
      %1482 = vmatpush.msra.mxu0 0.0
      %1483 = vmatpush.msra.mxu0 0.0
      %1484 = vmatpush.msra.mxu0 0.0
      %1485 = vmatpush.msra.mxu0 0.0
      %1486 = vmatpush.msra.mxu0 0.0
      %1487 = vmatpush.msra.mxu0 0.0
      %1488 = vmatpush.msra.mxu0 %v1465
      %1489 = vmatpush.msra.mxu0 %v1463
      %1490 = vmatmul.f32.gmra.mxu0 %v1469
      %v1491 = vpop.f32.mrf.mxu0
      %v1492 = vadd.f32 0.0, %v1491
      %1493 = vmatmul.f32.gmra.mxu0 %v1472
      %v1494 = vpop.f32.mrf.mxu0
      %v1495 = vadd.f32 0.0, %v1494
      %1496 = vdwg.mxu0
      %v1497 = vmul.f32 %v1387, %v1349
      %v1498 = vmul.f32 %v1390, %v1350
      %v1499 = vmul.f32 %v1422, %v1351
      %v1500 = vmul.f32 %v1425, %v1352
      %v1501 = vmul.f32 %v1457, %v1353
      %v1502 = vmul.f32 %v1460, %v1354
      %v1503 = vmul.f32 %v1492, %v1355
      %v1504 = vmul.f32 %v1495, %v1356
      %1513 = vrot.lane.b32.xlu0 %v1497, 16
      %v1514 = vpop.permute.xlu0 %1513
      %1515 = vrot.lane.b32.xlu0 %v1498, 16
      %v1516 = vpop.permute.xlu0 %1515
      %1517 = vrot.lane.b32.xlu0 %v1499, 16
      %v1518 = vpop.permute.xlu0 %1517
      %1519 = vrot.lane.b32.xlu0 %v1500, 16
      %v1520 = vpop.permute.xlu0 %1519
      %1521 = vrot.lane.b32.xlu0 %v1501, 16
      %v1522 = vpop.permute.xlu0 %1521
      %1523 = vrot.lane.b32.xlu0 %v1502, 16
      %v1524 = vpop.permute.xlu0 %1523
      %1525 = vrot.lane.b32.xlu0 %v1503, 16
      %v1526 = vpop.permute.xlu0 %1525
      %1527 = vrot.lane.b32.xlu0 %v1504, 16
      %v1528 = vpop.permute.xlu0 %1527
      %vm1537 = vcmask 195712
      %1538 = vst.msk [vmem:[#allocation2] sm:$0xff] %vm1537, %v1514
      %1539 = vst.msk [vmem:[#allocation2 + $0x8] sm:$0xff] %vm1537, %v1516
      %1540 = vst.msk [vmem:[#allocation2 + $0x10] sm:$0xff] %vm1537, %v1518
      %1541 = vst.msk [vmem:[#allocation2 + $0x18] sm:$0xff] %vm1537, %v1520
      %1542 = vst.msk [vmem:[#allocation2 + $0x20] sm:$0xff] %vm1537, %v1522
      %1543 = vst.msk [vmem:[#allocation2 + $0x28] sm:$0xff] %vm1537, %v1524
      %1544 = vst.msk [vmem:[#allocation2 + $0x30] sm:$0xff] %vm1537, %v1526
      %1545 = vst.msk [vmem:[#allocation2 + $0x38] sm:$0xff] %vm1537, %v1528
      %1546 = vrot.lane.b32.xlu0 %v287, 104
      %v1547 = vpop.permute.xlu0 %1546
      %1548 = vrot.lane.b32.xlu0 %v290, 104
      %v1549 = vpop.permute.xlu0 %1548
      %1550 = vrot.lane.b32.xlu0 %v287, 72
      %v1551 = vpop.permute.xlu0 %1550
      %1552 = vrot.lane.b32.xlu0 %v290, 72
      %v1553 = vpop.permute.xlu0 %1552
      %v1554 = vsel %vm316, %v1547, 0
      %v1556 = vsel %vm316, %v1549, 0
      %v1558 = vsel %vm316, %v1551, 0
      %v1560 = vsel %vm316, %v1553, 0
      %1562 = vmatpush.xpose.msra.mxu0 0.0
      %1563 = vmatpush.xpose.msra.mxu0 0.0
      %1564 = vmatpush.xpose.msra.mxu0 0.0
      %1565 = vmatpush.xpose.msra.mxu0 0.0
      %1566 = vmatpush.xpose.msra.mxu0 0.0
      %1567 = vmatpush.xpose.msra.mxu0 0.0
      %1568 = vmatpush.xpose.msra.mxu0 0.0
      %1569 = vmatpush.xpose.msra.mxu0 0.0
      %1570 = vmatpush.xpose.msra.mxu0 0.0
      %1571 = vmatpush.xpose.msra.mxu0 0.0
      %1572 = vmatpush.xpose.msra.mxu0 0.0
      %1573 = vmatpush.xpose.msra.mxu0 0.0
      %1574 = vmatpush.xpose.msra.mxu0 0.0
      %1575 = vmatpush.xpose.msra.mxu0 0.0
      %1576 = vmatpush.xpose.msra.mxu0 %v1560
      %1577 = vmatpush.xpose.msra.mxu0 %v1558
      %1578 = vmatmul.f32.gmra.mxu0 %v1554
      %v1579 = vpop.f32.mrf.mxu0
      %v1580 = vadd.f32 0.0, %v1579
      %1581 = vmatmul.f32.gmra.mxu0 %v1556
      %v1582 = vpop.f32.mrf.mxu0
      %v1583 = vadd.f32 0.0, %v1582
      %1584 = vdwg.mxu0
      %1585 = vrot.lane.b32.xlu0 %v293, 104
      %v1586 = vpop.permute.xlu0 %1585
      %1587 = vrot.lane.b32.xlu0 %v296, 104
      %v1588 = vpop.permute.xlu0 %1587
      %1589 = vrot.lane.b32.xlu0 %v293, 72
      %v1590 = vpop.permute.xlu0 %1589
      %1591 = vrot.lane.b32.xlu0 %v296, 72
      %v1592 = vpop.permute.xlu0 %1591
      %v1593 = vsel %vm316, %v1586, 0
      %v1595 = vsel %vm316, %v1588, 0
      %v1597 = vsel %vm316, %v1590, 0
      %v1599 = vsel %vm316, %v1592, 0
      %1601 = vmatpush.xpose.msra.mxu0 0.0
      %1602 = vmatpush.xpose.msra.mxu0 0.0
      %1603 = vmatpush.xpose.msra.mxu0 0.0
      %1604 = vmatpush.xpose.msra.mxu0 0.0
      %1605 = vmatpush.xpose.msra.mxu0 0.0
      %1606 = vmatpush.xpose.msra.mxu0 0.0
      %1607 = vmatpush.xpose.msra.mxu0 0.0
      %1608 = vmatpush.xpose.msra.mxu0 0.0
      %1609 = vmatpush.xpose.msra.mxu0 0.0
      %1610 = vmatpush.xpose.msra.mxu0 0.0
      %1611 = vmatpush.xpose.msra.mxu0 0.0
      %1612 = vmatpush.xpose.msra.mxu0 0.0
      %1613 = vmatpush.xpose.msra.mxu0 0.0
      %1614 = vmatpush.xpose.msra.mxu0 0.0
      %1615 = vmatpush.xpose.msra.mxu0 %v1599
      %1616 = vmatpush.xpose.msra.mxu0 %v1597
      %1617 = vmatmul.f32.gmra.mxu0 %v1593
      %v1618 = vpop.f32.mrf.mxu0
      %v1619 = vadd.f32 0.0, %v1618
      %1620 = vmatmul.f32.gmra.mxu0 %v1595
      %v1621 = vpop.f32.mrf.mxu0
      %v1622 = vadd.f32 0.0, %v1621
      %1623 = vdwg.mxu0
      %1624 = vrot.lane.b32.xlu0 %v299, 104
      %v1625 = vpop.permute.xlu0 %1624
      %1626 = vrot.lane.b32.xlu0 %v302, 104
      %v1627 = vpop.permute.xlu0 %1626
      %1628 = vrot.lane.b32.xlu0 %v299, 72
      %v1629 = vpop.permute.xlu0 %1628
      %1630 = vrot.lane.b32.xlu0 %v302, 72
      %v1631 = vpop.permute.xlu0 %1630
      %v1632 = vsel %vm316, %v1625, 0
      %v1634 = vsel %vm316, %v1627, 0
      %v1636 = vsel %vm316, %v1629, 0
      %v1638 = vsel %vm316, %v1631, 0
      %1640 = vmatpush.xpose.msra.mxu0 0.0
      %1641 = vmatpush.xpose.msra.mxu0 0.0
      %1642 = vmatpush.xpose.msra.mxu0 0.0
      %1643 = vmatpush.xpose.msra.mxu0 0.0
      %1644 = vmatpush.xpose.msra.mxu0 0.0
      %1645 = vmatpush.xpose.msra.mxu0 0.0
      %1646 = vmatpush.xpose.msra.mxu0 0.0
      %1647 = vmatpush.xpose.msra.mxu0 0.0
      %1648 = vmatpush.xpose.msra.mxu0 0.0
      %1649 = vmatpush.xpose.msra.mxu0 0.0
      %1650 = vmatpush.xpose.msra.mxu0 0.0
      %1651 = vmatpush.xpose.msra.mxu0 0.0
      %1652 = vmatpush.xpose.msra.mxu0 0.0
      %1653 = vmatpush.xpose.msra.mxu0 0.0
      %1654 = vmatpush.xpose.msra.mxu0 %v1638
      %1655 = vmatpush.xpose.msra.mxu0 %v1636
      %1656 = vmatmul.f32.gmra.mxu0 %v1632
      %v1657 = vpop.f32.mrf.mxu0
      %v1658 = vadd.f32 0.0, %v1657
      %1659 = vmatmul.f32.gmra.mxu0 %v1634
      %v1660 = vpop.f32.mrf.mxu0
      %v1661 = vadd.f32 0.0, %v1660
      %1662 = vdwg.mxu0
      %1663 = vrot.lane.b32.xlu0 %v305, 104
      %v1664 = vpop.permute.xlu0 %1663
      %1665 = vrot.lane.b32.xlu0 %v308, 104
      %v1666 = vpop.permute.xlu0 %1665
      %1667 = vrot.lane.b32.xlu0 %v305, 72
      %v1668 = vpop.permute.xlu0 %1667
      %1669 = vrot.lane.b32.xlu0 %v308, 72
      %v1670 = vpop.permute.xlu0 %1669
      %v1671 = vsel %vm316, %v1664, 0
      %v1673 = vsel %vm316, %v1666, 0
      %v1675 = vsel %vm316, %v1668, 0
      %v1677 = vsel %vm316, %v1670, 0
      %1679 = vmatpush.xpose.msra.mxu0 0.0
      %1680 = vmatpush.xpose.msra.mxu0 0.0
      %1681 = vmatpush.xpose.msra.mxu0 0.0
      %1682 = vmatpush.xpose.msra.mxu0 0.0
      %1683 = vmatpush.xpose.msra.mxu0 0.0
      %1684 = vmatpush.xpose.msra.mxu0 0.0
      %1685 = vmatpush.xpose.msra.mxu0 0.0
      %1686 = vmatpush.xpose.msra.mxu0 0.0
      %1687 = vmatpush.xpose.msra.mxu0 0.0
      %1688 = vmatpush.xpose.msra.mxu0 0.0
      %1689 = vmatpush.xpose.msra.mxu0 0.0
      %1690 = vmatpush.xpose.msra.mxu0 0.0
      %1691 = vmatpush.xpose.msra.mxu0 0.0
      %1692 = vmatpush.xpose.msra.mxu0 0.0
      %1693 = vmatpush.xpose.msra.mxu0 %v1677
      %1694 = vmatpush.xpose.msra.mxu0 %v1675
      %1695 = vmatmul.f32.gmra.mxu0 %v1671
      %v1696 = vpop.f32.mrf.mxu0
      %v1697 = vadd.f32 0.0, %v1696
      %1698 = vmatmul.f32.gmra.mxu0 %v1673
      %v1699 = vpop.f32.mrf.mxu0
      %v1700 = vadd.f32 0.0, %v1699
      %1701 = vdwg.mxu0
      %v1702 = vsel %vm459, %v1580, -inf
      %1703 = vmax.xlane.f32.xlu0 %v1702
      %v1704 = vpop.xlane.xlu0 %1703
      %v1705 = vsel %vm459, %v1583, -inf
      %1706 = vmax.xlane.f32.xlu0 %v1705
      %v1707 = vpop.xlane.xlu0 %1706
      %v1708 = vsel %vm459, %v1619, -inf
      %1709 = vmax.xlane.f32.xlu0 %v1708
      %v1710 = vpop.xlane.xlu0 %1709
      %v1711 = vsel %vm459, %v1622, -inf
      %1712 = vmax.xlane.f32.xlu0 %v1711
      %v1713 = vpop.xlane.xlu0 %1712
      %v1714 = vsel %vm459, %v1658, -inf
      %1715 = vmax.xlane.f32.xlu0 %v1714
      %v1716 = vpop.xlane.xlu0 %1715
      %v1717 = vsel %vm459, %v1661, -inf
      %1718 = vmax.xlane.f32.xlu0 %v1717
      %v1719 = vpop.xlane.xlu0 %1718
      %v1720 = vsel %vm459, %v1697, -inf
      %1721 = vmax.xlane.f32.xlu0 %v1720
      %v1722 = vpop.xlane.xlu0 %1721
      %v1723 = vsel %vm459, %v1700, -inf
      %1724 = vmax.xlane.f32.xlu0 %v1723
      %v1725 = vpop.xlane.xlu0 %1724
      %v1726 = vsub.f32 %v1580, %v1704
      %v1727 = vsub.f32 %v1583, %v1707
      %v1728 = vsub.f32 %v1619, %v1710
      %v1729 = vsub.f32 %v1622, %v1713
      %v1730 = vsub.f32 %v1658, %v1716
      %v1731 = vsub.f32 %v1661, %v1719
      %v1732 = vsub.f32 %v1697, %v1722
      %v1733 = vsub.f32 %v1700, %v1725
      %v1734 = vmul.f32 %v1726, 1.442695
      %v1735 = vpow.pop %v1734
      %v1736 = vmul.f32 %v1727, 1.442695
      %v1737 = vpow.pop %v1736
      %v1738 = vmul.f32 %v1728, 1.442695
      %v1739 = vpow.pop %v1738
      %v1740 = vmul.f32 %v1729, 1.442695
      %v1741 = vpow.pop %v1740
      %v1742 = vmul.f32 %v1730, 1.442695
      %v1743 = vpow.pop %v1742
      %v1744 = vmul.f32 %v1731, 1.442695
      %v1745 = vpow.pop %v1744
      %v1746 = vmul.f32 %v1732, 1.442695
      %v1747 = vpow.pop %v1746
      %v1748 = vmul.f32 %v1733, 1.442695
      %v1749 = vpow.pop %v1748
      %v1750 = vsel %vm459, %v1735, 0.0
      %1751 = vadd.xlane.f32.xlu0 %v1750
      %v1752 = vpop.xlane.xlu0 %1751
      %v1753 = vsel %vm459, %v1737, 0.0
      %1754 = vadd.xlane.f32.xlu0 %v1753
      %v1755 = vpop.xlane.xlu0 %1754
      %v1756 = vsel %vm459, %v1739, 0.0
      %1757 = vadd.xlane.f32.xlu0 %v1756
      %v1758 = vpop.xlane.xlu0 %1757
      %v1759 = vsel %vm459, %v1741, 0.0
      %1760 = vadd.xlane.f32.xlu0 %v1759
      %v1761 = vpop.xlane.xlu0 %1760
      %v1762 = vsel %vm459, %v1743, 0.0
      %1763 = vadd.xlane.f32.xlu0 %v1762
      %v1764 = vpop.xlane.xlu0 %1763
      %v1765 = vsel %vm459, %v1745, 0.0
      %1766 = vadd.xlane.f32.xlu0 %v1765
      %v1767 = vpop.xlane.xlu0 %1766
      %v1768 = vsel %vm459, %v1747, 0.0
      %1769 = vadd.xlane.f32.xlu0 %v1768
      %v1770 = vpop.xlane.xlu0 %1769
      %v1771 = vsel %vm459, %v1749, 0.0
      %1772 = vadd.xlane.f32.xlu0 %v1771
      %v1773 = vpop.xlane.xlu0 %1772
      %v1774 = vrcp.pop %v1752
      %v1775 = vrcp.pop %v1755
      %v1776 = vrcp.pop %v1758
      %v1777 = vrcp.pop %v1761
      %v1778 = vrcp.pop %v1764
      %v1779 = vrcp.pop %v1767
      %v1780 = vrcp.pop %v1770
      %v1781 = vrcp.pop %v1773
      %1782 = vrot.lane.b32.xlu0 %v287, 40
      %v1783 = vpop.permute.xlu0 %1782
      %1784 = vrot.lane.b32.xlu0 %v290, 40
      %v1785 = vpop.permute.xlu0 %1784
      %v1789 = vsel %vm459, %v1735, 0
      %v1792 = vsel %vm459, %v1737, 0
      %1794 = vmatpush.msra.mxu0 0.0
      %1795 = vmatpush.msra.mxu0 0.0
      %1796 = vmatpush.msra.mxu0 0.0
      %1797 = vmatpush.msra.mxu0 0.0
      %1798 = vmatpush.msra.mxu0 0.0
      %1799 = vmatpush.msra.mxu0 0.0
      %1800 = vmatpush.msra.mxu0 0.0
      %1801 = vmatpush.msra.mxu0 0.0
      %1802 = vmatpush.msra.mxu0 0.0
      %1803 = vmatpush.msra.mxu0 0.0
      %1804 = vmatpush.msra.mxu0 0.0
      %1805 = vmatpush.msra.mxu0 0.0
      %1806 = vmatpush.msra.mxu0 0.0
      %1807 = vmatpush.msra.mxu0 0.0
      %1808 = vmatpush.msra.mxu0 %v1785
      %1809 = vmatpush.msra.mxu0 %v1783
      %1810 = vmatmul.f32.gmra.mxu0 %v1789
      %v1811 = vpop.f32.mrf.mxu0
      %v1812 = vadd.f32 0.0, %v1811
      %1813 = vmatmul.f32.gmra.mxu0 %v1792
      %v1814 = vpop.f32.mrf.mxu0
      %v1815 = vadd.f32 0.0, %v1814
      %1816 = vdwg.mxu0
      %1817 = vrot.lane.b32.xlu0 %v293, 40
      %v1818 = vpop.permute.xlu0 %1817
      %1819 = vrot.lane.b32.xlu0 %v296, 40
      %v1820 = vpop.permute.xlu0 %1819
      %v1824 = vsel %vm459, %v1739, 0
      %v1827 = vsel %vm459, %v1741, 0
      %1829 = vmatpush.msra.mxu0 0.0
      %1830 = vmatpush.msra.mxu0 0.0
      %1831 = vmatpush.msra.mxu0 0.0
      %1832 = vmatpush.msra.mxu0 0.0
      %1833 = vmatpush.msra.mxu0 0.0
      %1834 = vmatpush.msra.mxu0 0.0
      %1835 = vmatpush.msra.mxu0 0.0
      %1836 = vmatpush.msra.mxu0 0.0
      %1837 = vmatpush.msra.mxu0 0.0
      %1838 = vmatpush.msra.mxu0 0.0
      %1839 = vmatpush.msra.mxu0 0.0
      %1840 = vmatpush.msra.mxu0 0.0
      %1841 = vmatpush.msra.mxu0 0.0
      %1842 = vmatpush.msra.mxu0 0.0
      %1843 = vmatpush.msra.mxu0 %v1820
      %1844 = vmatpush.msra.mxu0 %v1818
      %1845 = vmatmul.f32.gmra.mxu0 %v1824
      %v1846 = vpop.f32.mrf.mxu0
      %v1847 = vadd.f32 0.0, %v1846
      %1848 = vmatmul.f32.gmra.mxu0 %v1827
      %v1849 = vpop.f32.mrf.mxu0
      %v1850 = vadd.f32 0.0, %v1849
      %1851 = vdwg.mxu0
      %1852 = vrot.lane.b32.xlu0 %v299, 40
      %v1853 = vpop.permute.xlu0 %1852
      %1854 = vrot.lane.b32.xlu0 %v302, 40
      %v1855 = vpop.permute.xlu0 %1854
      %v1859 = vsel %vm459, %v1743, 0
      %v1862 = vsel %vm459, %v1745, 0
      %1864 = vmatpush.msra.mxu0 0.0
      %1865 = vmatpush.msra.mxu0 0.0
      %1866 = vmatpush.msra.mxu0 0.0
      %1867 = vmatpush.msra.mxu0 0.0
      %1868 = vmatpush.msra.mxu0 0.0
      %1869 = vmatpush.msra.mxu0 0.0
      %1870 = vmatpush.msra.mxu0 0.0
      %1871 = vmatpush.msra.mxu0 0.0
      %1872 = vmatpush.msra.mxu0 0.0
      %1873 = vmatpush.msra.mxu0 0.0
      %1874 = vmatpush.msra.mxu0 0.0
      %1875 = vmatpush.msra.mxu0 0.0
      %1876 = vmatpush.msra.mxu0 0.0
      %1877 = vmatpush.msra.mxu0 0.0
      %1878 = vmatpush.msra.mxu0 %v1855
      %1879 = vmatpush.msra.mxu0 %v1853
      %1880 = vmatmul.f32.gmra.mxu0 %v1859
      %v1881 = vpop.f32.mrf.mxu0
      %v1882 = vadd.f32 0.0, %v1881
      %1883 = vmatmul.f32.gmra.mxu0 %v1862
      %v1884 = vpop.f32.mrf.mxu0
      %v1885 = vadd.f32 0.0, %v1884
      %1886 = vdwg.mxu0
      %1887 = vrot.lane.b32.xlu0 %v305, 40
      %v1888 = vpop.permute.xlu0 %1887
      %1889 = vrot.lane.b32.xlu0 %v308, 40
      %v1890 = vpop.permute.xlu0 %1889
      %v1894 = vsel %vm459, %v1747, 0
      %v1897 = vsel %vm459, %v1749, 0
      %1899 = vmatpush.msra.mxu0 0.0
      %1900 = vmatpush.msra.mxu0 0.0
      %1901 = vmatpush.msra.mxu0 0.0
      %1902 = vmatpush.msra.mxu0 0.0
      %1903 = vmatpush.msra.mxu0 0.0
      %1904 = vmatpush.msra.mxu0 0.0
      %1905 = vmatpush.msra.mxu0 0.0
      %1906 = vmatpush.msra.mxu0 0.0
      %1907 = vmatpush.msra.mxu0 0.0
      %1908 = vmatpush.msra.mxu0 0.0
      %1909 = vmatpush.msra.mxu0 0.0
      %1910 = vmatpush.msra.mxu0 0.0
      %1911 = vmatpush.msra.mxu0 0.0
      %1912 = vmatpush.msra.mxu0 0.0
      %1913 = vmatpush.msra.mxu0 %v1890
      %1914 = vmatpush.msra.mxu0 %v1888
      %1915 = vmatmul.f32.gmra.mxu0 %v1894
      %v1916 = vpop.f32.mrf.mxu0
      %v1917 = vadd.f32 0.0, %v1916
      %1918 = vmatmul.f32.gmra.mxu0 %v1897
      %v1919 = vpop.f32.mrf.mxu0
      %v1920 = vadd.f32 0.0, %v1919
      %1921 = vdwg.mxu0
      %v1922 = vmul.f32 %v1812, %v1774
      %v1923 = vmul.f32 %v1815, %v1775
      %v1924 = vmul.f32 %v1847, %v1776
      %v1925 = vmul.f32 %v1850, %v1777
      %v1926 = vmul.f32 %v1882, %v1778
      %v1927 = vmul.f32 %v1885, %v1779
      %v1928 = vmul.f32 %v1917, %v1780
      %v1929 = vmul.f32 %v1920, %v1781
      %1938 = vrot.lane.b32.xlu0 %v1922, 24
      %v1939 = vpop.permute.xlu0 %1938
      %1940 = vrot.lane.b32.xlu0 %v1923, 24
      %v1941 = vpop.permute.xlu0 %1940
      %1942 = vrot.lane.b32.xlu0 %v1924, 24
      %v1943 = vpop.permute.xlu0 %1942
      %1944 = vrot.lane.b32.xlu0 %v1925, 24
      %v1945 = vpop.permute.xlu0 %1944
      %1946 = vrot.lane.b32.xlu0 %v1926, 24
      %v1947 = vpop.permute.xlu0 %1946
      %1948 = vrot.lane.b32.xlu0 %v1927, 24
      %v1949 = vpop.permute.xlu0 %1948
      %1950 = vrot.lane.b32.xlu0 %v1928, 24
      %v1951 = vpop.permute.xlu0 %1950
      %1952 = vrot.lane.b32.xlu0 %v1929, 24
      %v1953 = vpop.permute.xlu0 %1952
      %vm1962 = vcmask 261312
      %1963 = vst.msk [vmem:[#allocation2] sm:$0xff] %vm1962, %v1939
      %1964 = vst.msk [vmem:[#allocation2 + $0x8] sm:$0xff] %vm1962, %v1941
      %1965 = vst.msk [vmem:[#allocation2 + $0x10] sm:$0xff] %vm1962, %v1943
      %1966 = vst.msk [vmem:[#allocation2 + $0x18] sm:$0xff] %vm1962, %v1945
      %1967 = vst.msk [vmem:[#allocation2 + $0x20] sm:$0xff] %vm1962, %v1947
      %1968 = vst.msk [vmem:[#allocation2 + $0x28] sm:$0xff] %vm1962, %v1949
      %1969 = vst.msk [vmem:[#allocation2 + $0x30] sm:$0xff] %vm1962, %v1951
      %1970 = vst.msk [vmem:[#allocation2 + $0x38] sm:$0xff] %vm1962, %v1953
      %v1971 = vld [vmem:[#allocation2] sm:$0xff]
      %v1972 = vld [vmem:[#allocation2 + $0x8] sm:$0xff]
      %v1973 = vld [vmem:[#allocation2 + $0x10] sm:$0xff]
      %v1974 = vld [vmem:[#allocation2 + $0x18] sm:$0xff]
      %v1975 = vld [vmem:[#allocation2 + $0x20] sm:$0xff]
      %v1976 = vld [vmem:[#allocation2 + $0x28] sm:$0xff]
      %v1977 = vld [vmem:[#allocation2 + $0x30] sm:$0xff]
      %v1978 = vld [vmem:[#allocation2 + $0x38] sm:$0xff]
      %v1979 = vld [vmem:[%s3] sm:$0xff]
      %v1980 = vld [vmem:[%s3 + $0x8] sm:$0xff]
      %v1981 = vld [vmem:[%s3 + $0x10] sm:$0xff]
      %v1982 = vld [vmem:[%s3 + $0x18] sm:$0xff]
      %v1983 = vld [vmem:[%s4] sm:$0x1]
      %v1985 = vperm.slane %v1983, 0
      %v1988 = vsel %vm244, %v1971, 0
      %v1991 = vsel %vm244, %v1972, 0
      %v1994 = vsel %vm244, %v1973, 0
      %v1997 = vsel %vm244, %v1974, 0
      %v2000 = vsel %vm244, %v1975, 0
      %v2003 = vsel %vm244, %v1976, 0
      %v2006 = vsel %vm244, %v1977, 0
      %v2009 = vsel %vm244, %v1978, 0
      %2011 = vmatpush.msra.mxu0 0.0
      %2012 = vmatpush.msra.mxu0 0.0
      %2013 = vmatpush.msra.mxu0 0.0
      %2014 = vmatpush.msra.mxu0 0.0
      %2015 = vmatpush.msra.mxu0 0.0
      %2016 = vmatpush.msra.mxu0 0.0
      %2017 = vmatpush.msra.mxu0 0.0
      %2018 = vmatpush.msra.mxu0 0.0
      %2019 = vmatpush.msra.mxu0 0.0
      %2020 = vmatpush.msra.mxu0 0.0
      %2021 = vmatpush.msra.mxu0 0.0
      %2022 = vmatpush.msra.mxu0 0.0
      %2023 = vmatpush.msra.mxu0 %v1982
      %2024 = vmatpush.msra.mxu0 %v1981
      %2025 = vmatpush.msra.mxu0 %v1980
      %2026 = vmatpush.msra.mxu0 %v1979
      %2027 = vmatmul.f32.gmra.mxu0 %v1988
      %v2028 = vpop.f32.mrf.mxu0
      %v2029 = vadd.f32 %v1985, %v2028
      %2030 = vmatmul.f32.gmra.mxu0 %v1991
      %v2031 = vpop.f32.mrf.mxu0
      %v2032 = vadd.f32 %v1985, %v2031
      %2033 = vmatmul.f32.gmra.mxu0 %v1994
      %v2034 = vpop.f32.mrf.mxu0
      %v2035 = vadd.f32 %v1985, %v2034
      %2036 = vmatmul.f32.gmra.mxu0 %v1997
      %v2037 = vpop.f32.mrf.mxu0
      %v2038 = vadd.f32 %v1985, %v2037
      %2039 = vmatmul.f32.gmra.mxu0 %v2000
      %v2040 = vpop.f32.mrf.mxu0
      %v2041 = vadd.f32 %v1985, %v2040
      %2042 = vmatmul.f32.gmra.mxu0 %v2003
      %v2043 = vpop.f32.mrf.mxu0
      %v2044 = vadd.f32 %v1985, %v2043
      %2045 = vmatmul.f32.gmra.mxu0 %v2006
      %v2046 = vpop.f32.mrf.mxu0
      %v2047 = vadd.f32 %v1985, %v2046
      %2048 = vmatmul.f32.gmra.mxu0 %v2009
      %v2049 = vpop.f32.mrf.mxu0
      %v2050 = vadd.f32 %v1985, %v2049
      %2051 = vdwg.mxu0
      %2052 = vst.msk [vmem:[%s226] sm:$0xff] %vm244, %v2029
      %2053 = vst.msk [vmem:[%s226 + $0x8] sm:$0xff] %vm244, %v2032
      %2054 = vst.msk [vmem:[%s226 + $0x10] sm:$0xff] %vm244, %v2035
      %2055 = vst.msk [vmem:[%s226 + $0x18] sm:$0xff] %vm244, %v2038
      %2056 = vst.msk [vmem:[%s226 + $0x20] sm:$0xff] %vm244, %v2041
      %2057 = vst.msk [vmem:[%s226 + $0x28] sm:$0xff] %vm244, %v2044
      %2058 = vst.msk [vmem:[%s226 + $0x30] sm:$0xff] %vm244, %v2047
      %2059 = vst.msk [vmem:[%s226 + $0x38] sm:$0xff] %vm244, %v2050
      %s2060 = smul.u32 8, %s16
      %p2061 = scmp.lt.s32.totalorder %s2060, 31
      %s2062 = scalar_select %p2061, %s2060, 31
      %s2063 = smul.addr %s2062, 8
      %s2064 = scalar_lea.vmem %s5, %s2063
      // Predicated region
      $region41: #{tpu_custom_call.1} parent=39 // pred_check
        %p2065 = pneg %p144
      $region42: #{tpu_custom_call.1} parent=39 // pred_check_branch
        %2067 = sbr.rel (%p2065) target = $region44
      $region43: #{tpu_custom_call.1} parent=39 // pred_region
        %s2068 = smul.u32 8, %s16
      $region44: #{tpu_custom_call.1} parent=39 // pred_fallthru
        _
    $region40: #{tpu_custom_call.1} parent=5 // pred_fallthru
      _
    %p2069 = scmp.le.s32.totalorder 2, %s11
    // Predicated region
    $region45: #{tpu_custom_call.1} parent=5 // pred_check
      %p2070 = pneg %p2069
    $region46: #{tpu_custom_call.1} parent=5 // pred_check_branch
      %2072 = sbr.rel (%p2070) target = $region48
    $region47: #{tpu_custom_call.1} parent=5 // pred_region
      %s2073 = ssub.s32 %s11, 2
      // Predicated region
      $region49: #{tpu_custom_call.1} parent=47 // pred_check
        %p2074 = pneg %p150
      $region50: #{tpu_custom_call.1} parent=47 // pred_check_branch
        %2076 = sbr.rel (%p2074) target = $region52
      $region51: #{tpu_custom_call.1} parent=47 // pred_region
        %s2077 = smul.u32 8, %s17
        %p2078 = scmp.lt.s32.totalorder %s2077, 31
        %s2079 = scalar_select %p2078, %s2077, 31
        %s2080 = smul.addr %s2079, 8
        %s2081 = scalar_lea.vmem %s5, %s2080
      $region52: #{tpu_custom_call.1} parent=47 // pred_fallthru
        _
    $region48: #{tpu_custom_call.1} parent=5 // pred_fallthru
      _
  $region6: #{tpu_custom_call.1} parent=0 // loop_footer
    %s15 = sadd.s32 1, %s11
  $region7: #{tpu_custom_call.1} parent=0 // loop_footer_branch
    %10 = sbr.rel target = $region3
  $region8: #{tpu_custom_call.1} parent=0 // loop_exit
    _

</llo_original>
